<compile_context>
chip_gen: v6e
topology: v6e:2x2x1
jax: 0.10.0
libtpu: 0.0.40
codegen_flags: <defaults>
</compile_context>

<pallas_src>
import jax
import jax.numpy as jnp
from jax.experimental import pallas as pl
from jax.experimental.pallas import tpu as pltpu


def _round_up(x, m):
    return (x + m - 1) // m * m


def cnn_kernel(x_ref, w_ref, b_ref, o_ref):
    # x_ref: (TB, L*C_in)              bf16, lane-dense flattened NLC input tile
    # w_ref: (L*C_in, L_out*C_out_p)   bf16 block-Toeplitz conv weight
    # b_ref: (1, C_out_p)              f32 conv bias (channel-padded)
    # o_ref: (TB, C_out_p)             relu(maxpool(conv)) output tile
    C_out_p = b_ref.shape[1]
    L_out = w_ref.shape[1] // C_out_p

    # One fused MXU matmul: contraction depth L*C_in (=512), f32 accumulation.
    acc = jnp.dot(x_ref[...], w_ref[...],
                  preferred_element_type=jnp.float32)        # (TB, L_out*C_out_p)

    # Max-pool over the L_out time positions: running max over static,
    # 128-lane-aligned column slices (no reshape -> no relayout).
    pooled = acc[:, 0:C_out_p]
    for j in range(1, L_out):
        pooled = jnp.maximum(pooled, acc[:, j * C_out_p:(j + 1) * C_out_p])

    # Bias + ReLU after pooling (equivalent: bias is per-channel, relu/max monotone).
    o_ref[...] = jnp.maximum(pooled + b_ref[...], 0.0).astype(o_ref.dtype)


def cnn_forward(x_ncl, w_kio, b, *, batch_tile=1024, out_dtype=jnp.float32,
                interpret=False):
    """x_ncl: (B, C_in, L) PyTorch-layout input.
       w_kio: (K, C_in, C_out) conv weight (kernel-offset major).
       b: (C_out,) bias.  Returns (B, C_out) in `out_dtype` (default float32)."""
    B, C_in, L = x_ncl.shape
    K, _, C_out = w_kio.shape
    L_out = L - K + 1

    # Lane-dense / full-MXU-column output: pad channels to a multiple of 128.
    C_out_p = _round_up(max(C_out, 128), 128)

    # NCL -> NLC -> flatten to (B, L*C_in): lane-dense bf16 input, no in-kernel im2col.
    x2d = jnp.transpose(x_ncl, (0, 2, 1)).reshape(B, L * C_in).astype(jnp.bfloat16)

    # Block-Toeplitz weight:
    #   W[t*C_in + c, j*C_out_p + f] = w[t - j, c, f]  if 0 <= t - j < K else 0
    # so conv[b, j, f] = x2d[b, :] @ W[:, j*C_out_p + f].
    w_bf = w_kio.astype(jnp.bfloat16)                          # (K, C_in, C_out)
    W = jnp.zeros((L, C_in, L_out, C_out_p), jnp.bfloat16)
    for j in range(L_out):
        W = W.at[j:j + K, :, j, :C_out].set(w_bf)
    W = W.reshape(L * C_in, L_out * C_out_p)

    b_pad = jnp.pad(b.astype(jnp.float32), (0, C_out_p - C_out)).reshape(1, C_out_p)

    # Batch tiling: pick TB so B_pad does not badly overshoot B.
    num_tiles = max(1, -(-B // batch_tile))                    # ceil(B / batch_tile)
    TB = _round_up(-(-B // num_tiles), 8)                      # per-tile rows, 8-aligned
    B_pad = _round_up(B, TB)
    if B_pad != B:
        x2d = jnp.pad(x2d, ((0, B_pad - B), (0, 0)))

    out = pl.pallas_call(
        cnn_kernel,
        out_shape=jax.ShapeDtypeStruct((B_pad, C_out_p), out_dtype),
        grid=(B_pad // TB,),
        in_specs=[
            pl.BlockSpec((TB, L * C_in), lambda i: (i, 0)),
            pl.BlockSpec((L * C_in, L_out * C_out_p), lambda i: (0, 0)),
            pl.BlockSpec((1, C_out_p), lambda i: (0, 0)),
        ],
        out_specs=pl.BlockSpec((TB, C_out_p), lambda i: (i, 0)),
        compiler_params=pltpu.CompilerParams(
            dimension_semantics=("parallel",),
            vmem_limit_bytes=48 * 1024 * 1024),
        interpret=interpret,
    )(x2d, W, b_pad)

    return out[:B, :C_out]


def cnn_reference(x_ncl, w_kio, b):
    """Plain-JAX reference matching PyTorch Conv1d + ReLU + MaxPool1d + squeeze,
    using the same bf16-rounded inputs the kernel sees (f32 accumulation)."""
    B, C_in, L = x_ncl.shape
    K, _, C_out = w_kio.shape
    L_out = L - K + 1
    x_nlc = jnp.transpose(x_ncl, (0, 2, 1)).astype(jnp.bfloat16).astype(jnp.float32)
    w = w_kio.astype(jnp.bfloat16).astype(jnp.float32)
    acc = jnp.zeros((B, L_out, C_out), jnp.float32)
    for k in range(K):
        acc = acc + jnp.einsum("blc,cf->blf", x_nlc[:, k:k + L_out, :], w[k])
    acc = jax.nn.relu(acc + b[None, None, :].astype(jnp.float32))
    return jnp.max(acc, axis=1)


if __name__ == "__main__":
    # Module hyper-parameters (small, consistent with the a5 CNN).
    char_embed_size = 32    # C_in
    num_filters = 64        # C_out
    max_word_length = 16    # L
    kernel_size = 5         # K
    batch = 8               # B

    key = jax.random.PRNGKey(0)
    kx, kw, kb = jax.random.split(key, 3)

    # PyTorch Conv1d weight is (C_out, C_in, K); store kernel-offset-major (K, C_in, C_out).
    w_torch = jax.random.normal(kw, (num_filters, char_embed_size, kernel_size),
                                jnp.float32) * 0.1
    w_kio = jnp.transpose(w_torch, (2, 1, 0))                 # (K, C_in, C_out)
    bias = jax.random.normal(kb, (num_filters,), jnp.float32) * 0.1

    # Input in PyTorch NCL layout: (batch, char_embed_size, max_word_length).
    x = jax.random.normal(kx, (batch, char_embed_size, max_word_length),
                          jnp.float32)

    out = jax.block_until_ready(cnn_forward(x, w_kio, bias))
    ref = cnn_reference(x, w_kio, bias)
    assert out.shape == (batch, num_filters), out.shape
    assert jnp.allclose(out, ref, atol=2e-3, rtol=2e-3), \
        float(jnp.max(jnp.abs(out - ref)))

    # Second check: multi-tile grid + batch padding path (forced small batch_tile).
    batch2 = 20
    x2 = jax.random.normal(jax.random.PRNGKey(1),
                           (batch2, char_embed_size, max_word_length), jnp.float32)
    out2 = jax.block_until_ready(cnn_forward(x2, w_kio, bias, batch_tile=8))
    ref2 = cnn_reference(x2, w_kio, bias)
    assert out2.shape == (batch2, num_filters), out2.shape
    assert jnp.allclose(out2, ref2, atol=2e-3, rtol=2e-3), \
        float(jnp.max(jnp.abs(out2 - ref2)))

    print("KERNEL_OK")
</pallas_src>

<mosaic_0001>
module attributes {stable_mosaic.version = 11 : i64} {
  func.func @cnn_kernel(%arg0: i32, %arg1: memref<8x512xbf16, #tpu.memory_space<vmem>>, %arg2: memref<512x1536xbf16, #tpu.memory_space<vmem>>, %arg3: memref<1x128xf32, #tpu.memory_space<vmem>>, %arg4: memref<8x128xf32, #tpu.memory_space<vmem>>) attributes {dimension_semantics = [#tpu.dimension_semantics<parallel>], iteration_bounds = array<i64: 1>, scalar_prefetch = 0 : i64, scratch_operands = 0 : i64, tpu.core_type = #tpu.core_type<tc>, window_params = [{transform_indices = @transform_0, window_bounds = array<i64: 8, 512>}, {pipeline_mode = #tpu.pipeline_mode<synchronous>, transform_indices = @transform_1, window_bounds = array<i64: 512, 1536>}, {pipeline_mode = #tpu.pipeline_mode<synchronous>, transform_indices = @transform_2, window_bounds = array<i64: 1, 128>}, {transform_indices = @transform_3, window_bounds = array<i64: 8, 128>}]} {
    %c0 = arith.constant 0 : index
    %c0_0 = arith.constant 0 : index
    %0 = vector.load %arg1[%c0, %c0_0] : memref<8x512xbf16, #tpu.memory_space<vmem>>, vector<8x512xbf16>
    %c0_1 = arith.constant 0 : index
    %c0_2 = arith.constant 0 : index
    %1 = vector.load %arg2[%c0_1, %c0_2] : memref<512x1536xbf16, #tpu.memory_space<vmem>>, vector<512x1536xbf16>
    %cst = arith.constant dense<0.000000e+00> : vector<8x1536xf32>
    %2 = tpu.matmul %0, %1, %cst {dimension_numbers = #tpu.dot_dimension_numbers<[1], [0], [0], [1], [0, 0, 1, 1], [], []>} : vector<8x512xbf16>, vector<512x1536xbf16>, vector<8x1536xf32> -> vector<8x1536xf32>
    %3 = vector.extract_strided_slice %2 {offsets = [0, 0], sizes = [8, 128], strides = [1, 1]} : vector<8x1536xf32> to vector<8x128xf32>
    %4 = vector.extract_strided_slice %2 {offsets = [0, 128], sizes = [8, 128], strides = [1, 1]} : vector<8x1536xf32> to vector<8x128xf32>
    %5 = arith.maximumf %3, %4 : vector<8x128xf32>
    %6 = vector.extract_strided_slice %2 {offsets = [0, 256], sizes = [8, 128], strides = [1, 1]} : vector<8x1536xf32> to vector<8x128xf32>
    %7 = arith.maximumf %5, %6 : vector<8x128xf32>
    %8 = vector.extract_strided_slice %2 {offsets = [0, 384], sizes = [8, 128], strides = [1, 1]} : vector<8x1536xf32> to vector<8x128xf32>
    %9 = arith.maximumf %7, %8 : vector<8x128xf32>
    %10 = vector.extract_strided_slice %2 {offsets = [0, 512], sizes = [8, 128], strides = [1, 1]} : vector<8x1536xf32> to vector<8x128xf32>
    %11 = arith.maximumf %9, %10 : vector<8x128xf32>
    %12 = vector.extract_strided_slice %2 {offsets = [0, 640], sizes = [8, 128], strides = [1, 1]} : vector<8x1536xf32> to vector<8x128xf32>
    %13 = arith.maximumf %11, %12 : vector<8x128xf32>
    %14 = vector.extract_strided_slice %2 {offsets = [0, 768], sizes = [8, 128], strides = [1, 1]} : vector<8x1536xf32> to vector<8x128xf32>
    %15 = arith.maximumf %13, %14 : vector<8x128xf32>
    %16 = vector.extract_strided_slice %2 {offsets = [0, 896], sizes = [8, 128], strides = [1, 1]} : vector<8x1536xf32> to vector<8x128xf32>
    %17 = arith.maximumf %15, %16 : vector<8x128xf32>
    %18 = vector.extract_strided_slice %2 {offsets = [0, 1024], sizes = [8, 128], strides = [1, 1]} : vector<8x1536xf32> to vector<8x128xf32>
    %19 = arith.maximumf %17, %18 : vector<8x128xf32>
    %20 = vector.extract_strided_slice %2 {offsets = [0, 1152], sizes = [8, 128], strides = [1, 1]} : vector<8x1536xf32> to vector<8x128xf32>
    %21 = arith.maximumf %19, %20 : vector<8x128xf32>
    %22 = vector.extract_strided_slice %2 {offsets = [0, 1280], sizes = [8, 128], strides = [1, 1]} : vector<8x1536xf32> to vector<8x128xf32>
    %23 = arith.maximumf %21, %22 : vector<8x128xf32>
    %24 = vector.extract_strided_slice %2 {offsets = [0, 1408], sizes = [8, 128], strides = [1, 1]} : vector<8x1536xf32> to vector<8x128xf32>
    %25 = arith.maximumf %23, %24 : vector<8x128xf32>
    %c0_3 = arith.constant 0 : index
    %c0_4 = arith.constant 0 : index
    %26 = vector.load %arg3[%c0_3, %c0_4] : memref<1x128xf32, #tpu.memory_space<vmem>>, vector<1x128xf32>
    %27 = vector.broadcast %26 : vector<1x128xf32> to vector<8x128xf32>
    %28 = arith.addf %25, %27 : vector<8x128xf32>
    %cst_5 = arith.constant 0.000000e+00 : f32
    %29 = vector.broadcast %cst_5 : f32 to vector<8x128xf32>
    %30 = arith.maximumf %28, %29 : vector<8x128xf32>
    %c0_6 = arith.constant 0 : index
    %c0_7 = arith.constant 0 : index
    %31 = vector.load %arg4[%c0_6, %c0_7] : memref<8x128xf32, #tpu.memory_space<vmem>>, vector<8x128xf32>
    tpu.vector_store %arg4[%c0_6, %c0_7], %30 {strides = array<i32>} : memref<8x128xf32, #tpu.memory_space<vmem>>, vector<8x128xf32>,
    return
  }
  func.func @transform_0(%arg0: i32) -> (i32, i32) {
    %c0_i32 = arith.constant 0 : i32
    %c0_i32_0 = arith.constant 0 : i32
    return %arg0, %c0_i32 : i32, i32
  }
  func.func @transform_1(%arg0: i32) -> (i32, i32) {
    %c0_i32 = arith.constant 0 : i32
    %c0_i32_0 = arith.constant 0 : i32
    %c0_i32_1 = arith.constant 0 : i32
    return %c0_i32, %c0_i32_0 : i32, i32
  }
  func.func @transform_2(%arg0: i32) -> (i32, i32) {
    %c0_i32 = arith.constant 0 : i32
    %c0_i32_0 = arith.constant 0 : i32
    %c0_i32_1 = arith.constant 0 : i32
    return %c0_i32, %c0_i32_0 : i32, i32
  }
  func.func @transform_3(%arg0: i32) -> (i32, i32) {
    %c0_i32 = arith.constant 0 : i32
    %c0_i32_0 = arith.constant 0 : i32
    return %arg0, %c0_i32 : i32, i32
  }
}

</mosaic_0001>

<llo_original>
// kernel: tpu_custom_call.1
$region0: #{tpu_custom_call.1}
  #allocation0 [shape = 'u32[]', space=smem, size = 0x4, offset = 0x4, fixed_abs, tag = 'smem constant byte address 0x4 - core index']
  #allocation1 [shape = 'u32[144,128]{1,0:T(1,128)}', space=vmem, size = 0x12000, scoped, tag = 'internal scratch']
  %s0 = inlined_call_operand.hbm [shape: bf16[8,512], index: 0, kind: input, shape index: {}]
  %s1 = inlined_call_operand.hbm [shape: bf16[512,1536], index: 1, kind: input, shape index: {}]
  %s2 = inlined_call_operand.hbm [shape: f32[1,128], index: 2, kind: input, shape index: {}]
  %s3 = inlined_call_operand.hbm [shape: f32[8,128], index: 3, kind: output, shape index: {}]
  %s4 = sld [smem:[#allocation0]]
  $region34: #{tpu_custom_call.1} parent=0
    _
  %s6 = ssub.s32 1, %s4
  %s7 = scalar_select 0, %s6, %s4
  $region1: #{tpu_custom_call.1} parent=0
    #allocation2 [shape = 'u8[8192]{0}', space=vmem, size = 0x2000, scoped, tag = 'input window, operand 0, single buffered']
    #allocation3 [shape = 's32[1]{0}', space=sflag, size = 0x4, scoped, tag = 'scoped memory for tpu_custom_call.1']
    #allocation4 [shape = 's32[1]{0}', space=sflag, size = 0x4, scoped, tag = 'scoped memory for tpu_custom_call.1']
    #allocation5 [shape = 'u8[1572864]{0}', space=vmem, size = 0x180000, scoped, tag = 'input window, operand 1, single buffered']
    #allocation6 [shape = 's32[1]{0}', space=sflag, size = 0x4, scoped, tag = 'scoped memory for tpu_custom_call.1']
    #allocation7 [shape = 'u8[512]{0}', space=vmem, size = 0x400, scoped, tag = 'input window, operand 2, single buffered']
    #allocation8 [shape = 'u8[4096]{0}', space=vmem, size = 0x1000, scoped, tag = 'output window, operand 0, single buffered']
    %8 = vsyncpa [#allocation3], 0
    %9 = vsyncpa [#allocation6], 0
    %10 = vsyncpa [#allocation4], 0
    // Predicated region
    $region2: #{tpu_custom_call.1} parent=1 // pred_check
      _
    $region3: #{tpu_custom_call.1} parent=1 // pred_check_branch
      %12 = sbr.rel (0) target = $region5
    $region4: #{tpu_custom_call.1} parent=1 // pred_region
      %s14 = ssub.s32 256, 256
      %15 = vsyncadd [#allocation3], %s14
      %s17 = sshll.u32 [#allocation2], 4
      %s18 = int_to_ptr.vmem [resolvable:$true] %s17
      %20 = dma.hbm_to_vmem [thread:$0]  %s0, 256, %s18, [#allocation3]
    $region5: #{tpu_custom_call.1} parent=1 // pred_fallthru
      _
    // Predicated region
    $region6: #{tpu_custom_call.1} parent=1 // pred_check
      _
    $region7: #{tpu_custom_call.1} parent=1 // pred_check_branch
      %22 = sbr.rel (0) target = $region9
    $region8: #{tpu_custom_call.1} parent=1 // pred_region
      %s24 = ssub.s32 49152, 49152
      %25 = vsyncadd [#allocation6], %s24
      %s26 = sshll.u32 [#allocation5], 4
      %s27 = int_to_ptr.vmem [resolvable:$true] %s26
      %32 = dma.hbm_to_vmem [thread:$0]  %s1, 49152, %s27, [#allocation6], 768, 768, 48
    $region9: #{tpu_custom_call.1} parent=1 // pred_fallthru
      _
    // Predicated region
    $region10: #{tpu_custom_call.1} parent=1 // pred_check
      _
    $region11: #{tpu_custom_call.1} parent=1 // pred_check_branch
      %34 = sbr.rel (0) target = $region13
    $region12: #{tpu_custom_call.1} parent=1 // pred_region
      %s36 = ssub.s32 16, 16
      %37 = vsyncadd [#allocation6], %s36
      %s39 = sshll.u32 [#allocation7], 4
      %s40 = int_to_ptr.vmem [resolvable:$true] %s39
      %42 = dma.hbm_to_vmem [thread:$0]  %s2, 16, %s40, [#allocation6]
    $region13: #{tpu_custom_call.1} parent=1 // pred_fallthru
      _
    // Predicated region
    $region14: #{tpu_custom_call.1} parent=1 // pred_check
      _
    $region15: #{tpu_custom_call.1} parent=1 // pred_check_branch
      %44 = sbr.rel (0) target = $region17
    $region16: #{tpu_custom_call.1} parent=1 // pred_region
      %45 = dma.done [#allocation3], 256
    $region17: #{tpu_custom_call.1} parent=1 // pred_fallthru
      _
    // Predicated region
    $region18: #{tpu_custom_call.1} parent=1 // pred_check
      _
    $region19: #{tpu_custom_call.1} parent=1 // pred_check_branch
      %47 = sbr.rel (0) target = $region21
    $region20: #{tpu_custom_call.1} parent=1 // pred_region
      %48 = dma.done [#allocation6], 49152
    $region21: #{tpu_custom_call.1} parent=1 // pred_fallthru
      _
    // Predicated region
    $region22: #{tpu_custom_call.1} parent=1 // pred_check
      _
    $region23: #{tpu_custom_call.1} parent=1 // pred_check_branch
      %50 = sbr.rel (0) target = $region25
    $region24: #{tpu_custom_call.1} parent=1 // pred_region
      %51 = dma.done [#allocation6], 16
    $region25: #{tpu_custom_call.1} parent=1 // pred_fallthru
      _
    %v52 = vld [vmem:[#allocation2] sm:$0xff]
    %v53 = vld [vmem:[#allocation2 + $0x8] sm:$0xff]
    %v54 = vld [vmem:[#allocation5] sm:$0xff]
    %v55 = vld [vmem:[#allocation5 + $0x8] sm:$0xff]
    %v56 = vld [vmem:[#allocation5 + $0x10] sm:$0xff]
    %v57 = vld [vmem:[#allocation5 + $0x18] sm:$0xff]
    %v58 = vld [vmem:[#allocation5 + $0x20] sm:$0xff]
    %v59 = vld [vmem:[#allocation5 + $0x28] sm:$0xff]
    %v60 = vld [vmem:[#allocation5 + $0x30] sm:$0xff]
    %v61 = vld [vmem:[#allocation5 + $0x38] sm:$0xff]
    %v62 = vld [vmem:[#allocation5 + $0x40] sm:$0xff]
    %v63 = vld [vmem:[#allocation5 + $0x48] sm:$0xff]
    %v64 = vld [vmem:[#allocation5 + $0x50] sm:$0xff]
    %v65 = vld [vmem:[#allocation5 + $0x58] sm:$0xff]
    %v66 = vld [vmem:[#allocation5 + $0x60] sm:$0xff]
    %v67 = vld [vmem:[#allocation5 + $0x68] sm:$0xff]
    %v68 = vld [vmem:[#allocation5 + $0x70] sm:$0xff]
    %v69 = vld [vmem:[#allocation5 + $0x78] sm:$0xff]
    %v70 = vld [vmem:[#allocation5 + $0x80] sm:$0xff]
    %v71 = vld [vmem:[#allocation5 + $0x88] sm:$0xff]
    %v72 = vld [vmem:[#allocation5 + $0x90] sm:$0xff]
    %v73 = vld [vmem:[#allocation5 + $0x98] sm:$0xff]
    %v74 = vld [vmem:[#allocation5 + $0xa0] sm:$0xff]
    %v75 = vld [vmem:[#allocation5 + $0xa8] sm:$0xff]
    %v76 = vld [vmem:[#allocation5 + $0xb0] sm:$0xff]
    %v77 = vld [vmem:[#allocation5 + $0xb8] sm:$0xff]
    %v78 = vld [vmem:[#allocation5 + $0xc0] sm:$0xff]
    %v79 = vld [vmem:[#allocation5 + $0xc8] sm:$0xff]
    %v80 = vld [vmem:[#allocation5 + $0xd0] sm:$0xff]
    %v81 = vld [vmem:[#allocation5 + $0xd8] sm:$0xff]
    %v82 = vld [vmem:[#allocation5 + $0xe0] sm:$0xff]
    %v83 = vld [vmem:[#allocation5 + $0xe8] sm:$0xff]
    %v84 = vld [vmem:[#allocation5 + $0xf0] sm:$0xff]
    %v85 = vld [vmem:[#allocation5 + $0xf8] sm:$0xff]
    %v86 = vld [vmem:[#allocation5 + $0x100] sm:$0xff]
    %v87 = vld [vmem:[#allocation5 + $0x108] sm:$0xff]
    %v88 = vld [vmem:[#allocation5 + $0x110] sm:$0xff]
    %v89 = vld [vmem:[#allocation5 + $0x118] sm:$0xff]
    %v90 = vld [vmem:[#allocation5 + $0x120] sm:$0xff]
    %v91 = vld [vmem:[#allocation5 + $0x128] sm:$0xff]
    %v92 = vld [vmem:[#allocation5 + $0x130] sm:$0xff]
    %v93 = vld [vmem:[#allocation5 + $0x138] sm:$0xff]
    %v94 = vld [vmem:[#allocation5 + $0x140] sm:$0xff]
    %v95 = vld [vmem:[#allocation5 + $0x148] sm:$0xff]
    %v96 = vld [vmem:[#allocation5 + $0x150] sm:$0xff]
    %v97 = vld [vmem:[#allocation5 + $0x158] sm:$0xff]
    %v98 = vld [vmem:[#allocation5 + $0x160] sm:$0xff]
    %v99 = vld [vmem:[#allocation5 + $0x168] sm:$0xff]
    %v100 = vld [vmem:[#allocation5 + $0x170] sm:$0xff]
    %v101 = vld [vmem:[#allocation5 + $0x178] sm:$0xff]
    %v102 = vld [vmem:[#allocation5 + $0x180] sm:$0xff]
    %v103 = vld [vmem:[#allocation5 + $0x188] sm:$0xff]
    %v104 = vld [vmem:[#allocation5 + $0x190] sm:$0xff]
    %v105 = vld [vmem:[#allocation5 + $0x198] sm:$0xff]
    %v106 = vld [vmem:[#allocation5 + $0x1a0] sm:$0xff]
    %v107 = vld [vmem:[#allocation5 + $0x1a8] sm:$0xff]
    %v108 = vld [vmem:[#allocation5 + $0x1b0] sm:$0xff]
    %v109 = vld [vmem:[#allocation5 + $0x1b8] sm:$0xff]
    %v110 = vld [vmem:[#allocation5 + $0x1c0] sm:$0xff]
    %v111 = vld [vmem:[#allocation5 + $0x1c8] sm:$0xff]
    %v112 = vld [vmem:[#allocation5 + $0x1d0] sm:$0xff]
    %v113 = vld [vmem:[#allocation5 + $0x1d8] sm:$0xff]
    %v114 = vld [vmem:[#allocation5 + $0x1e0] sm:$0xff]
    %v115 = vld [vmem:[#allocation5 + $0x1e8] sm:$0xff]
    %v116 = vld [vmem:[#allocation5 + $0x1f0] sm:$0xff]
    %v117 = vld [vmem:[#allocation5 + $0x1f8] sm:$0xff]
    %v118 = vld [vmem:[#allocation5 + $0x200] sm:$0xff]
    %v119 = vld [vmem:[#allocation5 + $0x208] sm:$0xff]
    %v120 = vld [vmem:[#allocation5 + $0x210] sm:$0xff]
    %v121 = vld [vmem:[#allocation5 + $0x218] sm:$0xff]
    %v122 = vld [vmem:[#allocation5 + $0x220] sm:$0xff]
    %v123 = vld [vmem:[#allocation5 + $0x228] sm:$0xff]
    %v124 = vld [vmem:[#allocation5 + $0x230] sm:$0xff]
    %v125 = vld [vmem:[#allocation5 + $0x238] sm:$0xff]
    %v126 = vld [vmem:[#allocation5 + $0x240] sm:$0xff]
    %v127 = vld [vmem:[#allocation5 + $0x248] sm:$0xff]
    %v128 = vld [vmem:[#allocation5 + $0x250] sm:$0xff]
    %v129 = vld [vmem:[#allocation5 + $0x258] sm:$0xff]
    %v130 = vld [vmem:[#allocation5 + $0x260] sm:$0xff]
    %v131 = vld [vmem:[#allocation5 + $0x268] sm:$0xff]
    %v132 = vld [vmem:[#allocation5 + $0x270] sm:$0xff]
    %v133 = vld [vmem:[#allocation5 + $0x278] sm:$0xff]
    %v134 = vld [vmem:[#allocation5 + $0x280] sm:$0xff]
    %v135 = vld [vmem:[#allocation5 + $0x288] sm:$0xff]
    %v136 = vld [vmem:[#allocation5 + $0x290] sm:$0xff]
    %v137 = vld [vmem:[#allocation5 + $0x298] sm:$0xff]
    %v138 = vld [vmem:[#allocation5 + $0x2a0] sm:$0xff]
    %v139 = vld [vmem:[#allocation5 + $0x2a8] sm:$0xff]
    %v140 = vld [vmem:[#allocation5 + $0x2b0] sm:$0xff]
    %v141 = vld [vmem:[#allocation5 + $0x2b8] sm:$0xff]
    %v142 = vld [vmem:[#allocation5 + $0x2c0] sm:$0xff]
    %v143 = vld [vmem:[#allocation5 + $0x2c8] sm:$0xff]
    %v144 = vld [vmem:[#allocation5 + $0x2d0] sm:$0xff]
    %v145 = vld [vmem:[#allocation5 + $0x2d8] sm:$0xff]
    %v146 = vld [vmem:[#allocation5 + $0x2e0] sm:$0xff]
    %v147 = vld [vmem:[#allocation5 + $0x2e8] sm:$0xff]
    %v148 = vld [vmem:[#allocation5 + $0x2f0] sm:$0xff]
    %v149 = vld [vmem:[#allocation5 + $0x2f8] sm:$0xff]
    %v150 = vld [vmem:[#allocation5 + $0x300] sm:$0xff]
    %v151 = vld [vmem:[#allocation5 + $0x308] sm:$0xff]
    %v152 = vld [vmem:[#allocation5 + $0x310] sm:$0xff]
    %v153 = vld [vmem:[#allocation5 + $0x318] sm:$0xff]
    %v154 = vld [vmem:[#allocation5 + $0x320] sm:$0xff]
    %v155 = vld [vmem:[#allocation5 + $0x328] sm:$0xff]
    %v156 = vld [vmem:[#allocation5 + $0x330] sm:$0xff]
    %v157 = vld [vmem:[#allocation5 + $0x338] sm:$0xff]
    %v158 = vld [vmem:[#allocation5 + $0x340] sm:$0xff]
    %v159 = vld [vmem:[#allocation5 + $0x348] sm:$0xff]
    %v160 = vld [vmem:[#allocation5 + $0x350] sm:$0xff]
    %v161 = vld [vmem:[#allocation5 + $0x358] sm:$0xff]
    %v162 = vld [vmem:[#allocation5 + $0x360] sm:$0xff]
    %v163 = vld [vmem:[#allocation5 + $0x368] sm:$0xff]
    %v164 = vld [vmem:[#allocation5 + $0x370] sm:$0xff]
    %v165 = vld [vmem:[#allocation5 + $0x378] sm:$0xff]
    %v166 = vld [vmem:[#allocation5 + $0x380] sm:$0xff]
    %v167 = vld [vmem:[#allocation5 + $0x388] sm:$0xff]
    %v168 = vld [vmem:[#allocation5 + $0x390] sm:$0xff]
    %v169 = vld [vmem:[#allocation5 + $0x398] sm:$0xff]
    %v170 = vld [vmem:[#allocation5 + $0x3a0] sm:$0xff]
    %v171 = vld [vmem:[#allocation5 + $0x3a8] sm:$0xff]
    %v172 = vld [vmem:[#allocation5 + $0x3b0] sm:$0xff]
    %v173 = vld [vmem:[#allocation5 + $0x3b8] sm:$0xff]
    %v174 = vld [vmem:[#allocation5 + $0x3c0] sm:$0xff]
    %v175 = vld [vmem:[#allocation5 + $0x3c8] sm:$0xff]
    %v176 = vld [vmem:[#allocation5 + $0x3d0] sm:$0xff]
    %v177 = vld [vmem:[#allocation5 + $0x3d8] sm:$0xff]
    %v178 = vld [vmem:[#allocation5 + $0x3e0] sm:$0xff]
    %v179 = vld [vmem:[#allocation5 + $0x3e8] sm:$0xff]
    %v180 = vld [vmem:[#allocation5 + $0x3f0] sm:$0xff]
    %v181 = vld [vmem:[#allocation5 + $0x3f8] sm:$0xff]
    %v182 = vld [vmem:[#allocation5 + $0x400] sm:$0xff]
    %v183 = vld [vmem:[#allocation5 + $0x408] sm:$0xff]
    %v184 = vld [vmem:[#allocation5 + $0x410] sm:$0xff]
    %v185 = vld [vmem:[#allocation5 + $0x418] sm:$0xff]
    %v186 = vld [vmem:[#allocation5 + $0x420] sm:$0xff]
    %v187 = vld [vmem:[#allocation5 + $0x428] sm:$0xff]
    %v188 = vld [vmem:[#allocation5 + $0x430] sm:$0xff]
    %v189 = vld [vmem:[#allocation5 + $0x438] sm:$0xff]
    %v190 = vld [vmem:[#allocation5 + $0x440] sm:$0xff]
    %v191 = vld [vmem:[#allocation5 + $0x448] sm:$0xff]
    %v192 = vld [vmem:[#allocation5 + $0x450] sm:$0xff]
    %v193 = vld [vmem:[#allocation5 + $0x458] sm:$0xff]
    %v194 = vld [vmem:[#allocation5 + $0x460] sm:$0xff]
    %v195 = vld [vmem:[#allocation5 + $0x468] sm:$0xff]
    %v196 = vld [vmem:[#allocation5 + $0x470] sm:$0xff]
    %v197 = vld [vmem:[#allocation5 + $0x478] sm:$0xff]
    %v198 = vld [vmem:[#allocation5 + $0x480] sm:$0xff]
    %v199 = vld [vmem:[#allocation5 + $0x488] sm:$0xff]
    %v200 = vld [vmem:[#allocation5 + $0x490] sm:$0xff]
    %v201 = vld [vmem:[#allocation5 + $0x498] sm:$0xff]
    %v202 = vld [vmem:[#allocation5 + $0x4a0] sm:$0xff]
    %v203 = vld [vmem:[#allocation5 + $0x4a8] sm:$0xff]
    %v204 = vld [vmem:[#allocation5 + $0x4b0] sm:$0xff]
    %v205 = vld [vmem:[#allocation5 + $0x4b8] sm:$0xff]
    %v206 = vld [vmem:[#allocation5 + $0x4c0] sm:$0xff]
    %v207 = vld [vmem:[#allocation5 + $0x4c8] sm:$0xff]
    %v208 = vld [vmem:[#allocation5 + $0x4d0] sm:$0xff]
    %v209 = vld [vmem:[#allocation5 + $0x4d8] sm:$0xff]
    %v210 = vld [vmem:[#allocation5 + $0x4e0] sm:$0xff]
    %v211 = vld [vmem:[#allocation5 + $0x4e8] sm:$0xff]
    %v212 = vld [vmem:[#allocation5 + $0x4f0] sm:$0xff]
    %v213 = vld [vmem:[#allocation5 + $0x4f8] sm:$0xff]
    %v214 = vld [vmem:[#allocation5 + $0x500] sm:$0xff]
    %v215 = vld [vmem:[#allocation5 + $0x508] sm:$0xff]
    %v216 = vld [vmem:[#allocation5 + $0x510] sm:$0xff]
    %v217 = vld [vmem:[#allocation5 + $0x518] sm:$0xff]
    %v218 = vld [vmem:[#allocation5 + $0x520] sm:$0xff]
    %v219 = vld [vmem:[#allocation5 + $0x528] sm:$0xff]
    %v220 = vld [vmem:[#allocation5 + $0x530] sm:$0xff]
    %v221 = vld [vmem:[#allocation5 + $0x538] sm:$0xff]
    %v222 = vld [vmem:[#allocation5 + $0x540] sm:$0xff]
    %v223 = vld [vmem:[#allocation5 + $0x548] sm:$0xff]
    %v224 = vld [vmem:[#allocation5 + $0x550] sm:$0xff]
    %v225 = vld [vmem:[#allocation5 + $0x558] sm:$0xff]
    %v226 = vld [vmem:[#allocation5 + $0x560] sm:$0xff]
    %v227 = vld [vmem:[#allocation5 + $0x568] sm:$0xff]
    %v228 = vld [vmem:[#allocation5 + $0x570] sm:$0xff]
    %v229 = vld [vmem:[#allocation5 + $0x578] sm:$0xff]
    %v230 = vld [vmem:[#allocation5 + $0x580] sm:$0xff]
    %v231 = vld [vmem:[#allocation5 + $0x588] sm:$0xff]
    %v232 = vld [vmem:[#allocation5 + $0x590] sm:$0xff]
    %v233 = vld [vmem:[#allocation5 + $0x598] sm:$0xff]
    %v234 = vld [vmem:[#allocation5 + $0x5a0] sm:$0xff]
    %v235 = vld [vmem:[#allocation5 + $0x5a8] sm:$0xff]
    %v236 = vld [vmem:[#allocation5 + $0x5b0] sm:$0xff]
    %v237 = vld [vmem:[#allocation5 + $0x5b8] sm:$0xff]
    %v238 = vld [vmem:[#allocation5 + $0x5c0] sm:$0xff]
    %v239 = vld [vmem:[#allocation5 + $0x5c8] sm:$0xff]
    %v240 = vld [vmem:[#allocation5 + $0x5d0] sm:$0xff]
    %v241 = vld [vmem:[#allocation5 + $0x5d8] sm:$0xff]
    %v242 = vld [vmem:[#allocation5 + $0x5e0] sm:$0xff]
    %v243 = vld [vmem:[#allocation5 + $0x5e8] sm:$0xff]
    %v244 = vld [vmem:[#allocation5 + $0x5f0] sm:$0xff]
    %v245 = vld [vmem:[#allocation5 + $0x5f8] sm:$0xff]
    %v246 = vld [vmem:[#allocation5 + $0x600] sm:$0xff]
    %v247 = vld [vmem:[#allocation5 + $0x608] sm:$0xff]
    %v248 = vld [vmem:[#allocation5 + $0x610] sm:$0xff]
    %v249 = vld [vmem:[#allocation5 + $0x618] sm:$0xff]
    %v250 = vld [vmem:[#allocation5 + $0x620] sm:$0xff]
    %v251 = vld [vmem:[#allocation5 + $0x628] sm:$0xff]
    %v252 = vld [vmem:[#allocation5 + $0x630] sm:$0xff]
    %v253 = vld [vmem:[#allocation5 + $0x638] sm:$0xff]
    %v254 = vld [vmem:[#allocation5 + $0x640] sm:$0xff]
    %v255 = vld [vmem:[#allocation5 + $0x648] sm:$0xff]
    %v256 = vld [vmem:[#allocation5 + $0x650] sm:$0xff]
    %v257 = vld [vmem:[#allocation5 + $0x658] sm:$0xff]
    %v258 = vld [vmem:[#allocation5 + $0x660] sm:$0xff]
    %v259 = vld [vmem:[#allocation5 + $0x668] sm:$0xff]
    %v260 = vld [vmem:[#allocation5 + $0x670] sm:$0xff]
    %v261 = vld [vmem:[#allocation5 + $0x678] sm:$0xff]
    %v262 = vld [vmem:[#allocation5 + $0x680] sm:$0xff]
    %v263 = vld [vmem:[#allocation5 + $0x688] sm:$0xff]
    %v264 = vld [vmem:[#allocation5 + $0x690] sm:$0xff]
    %v265 = vld [vmem:[#allocation5 + $0x698] sm:$0xff]
    %v266 = vld [vmem:[#allocation5 + $0x6a0] sm:$0xff]
    %v267 = vld [vmem:[#allocation5 + $0x6a8] sm:$0xff]
    %v268 = vld [vmem:[#allocation5 + $0x6b0] sm:$0xff]
    %v269 = vld [vmem:[#allocation5 + $0x6b8] sm:$0xff]
    %v270 = vld [vmem:[#allocation5 + $0x6c0] sm:$0xff]
    %v271 = vld [vmem:[#allocation5 + $0x6c8] sm:$0xff]
    %v272 = vld [vmem:[#allocation5 + $0x6d0] sm:$0xff]
    %v273 = vld [vmem:[#allocation5 + $0x6d8] sm:$0xff]
    %v274 = vld [vmem:[#allocation5 + $0x6e0] sm:$0xff]
    %v275 = vld [vmem:[#allocation5 + $0x6e8] sm:$0xff]
    %v276 = vld [vmem:[#allocation5 + $0x6f0] sm:$0xff]
    %v277 = vld [vmem:[#allocation5 + $0x6f8] sm:$0xff]
    %v278 = vld [vmem:[#allocation5 + $0x700] sm:$0xff]
    %v279 = vld [vmem:[#allocation5 + $0x708] sm:$0xff]
    %v280 = vld [vmem:[#allocation5 + $0x710] sm:$0xff]
    %v281 = vld [vmem:[#allocation5 + $0x718] sm:$0xff]
    %v282 = vld [vmem:[#allocation5 + $0x720] sm:$0xff]
    %v283 = vld [vmem:[#allocation5 + $0x728] sm:$0xff]
    %v284 = vld [vmem:[#allocation5 + $0x730] sm:$0xff]
    %v285 = vld [vmem:[#allocation5 + $0x738] sm:$0xff]
    %v286 = vld [vmem:[#allocation5 + $0x740] sm:$0xff]
    %v287 = vld [vmem:[#allocation5 + $0x748] sm:$0xff]
    %v288 = vld [vmem:[#allocation5 + $0x750] sm:$0xff]
    %v289 = vld [vmem:[#allocation5 + $0x758] sm:$0xff]
    %v290 = vld [vmem:[#allocation5 + $0x760] sm:$0xff]
    %v291 = vld [vmem:[#allocation5 + $0x768] sm:$0xff]
    %v292 = vld [vmem:[#allocation5 + $0x770] sm:$0xff]
    %v293 = vld [vmem:[#allocation5 + $0x778] sm:$0xff]
    %v294 = vld [vmem:[#allocation5 + $0x780] sm:$0xff]
    %v295 = vld [vmem:[#allocation5 + $0x788] sm:$0xff]
    %v296 = vld [vmem:[#allocation5 + $0x790] sm:$0xff]
    %v297 = vld [vmem:[#allocation5 + $0x798] sm:$0xff]
    %v298 = vld [vmem:[#allocation5 + $0x7a0] sm:$0xff]
    %v299 = vld [vmem:[#allocation5 + $0x7a8] sm:$0xff]
    %v300 = vld [vmem:[#allocation5 + $0x7b0] sm:$0xff]
    %v301 = vld [vmem:[#allocation5 + $0x7b8] sm:$0xff]
    %v302 = vld [vmem:[#allocation5 + $0x7c0] sm:$0xff]
    %v303 = vld [vmem:[#allocation5 + $0x7c8] sm:$0xff]
    %v304 = vld [vmem:[#allocation5 + $0x7d0] sm:$0xff]
    %v305 = vld [vmem:[#allocation5 + $0x7d8] sm:$0xff]
    %v306 = vld [vmem:[#allocation5 + $0x7e0] sm:$0xff]
    %v307 = vld [vmem:[#allocation5 + $0x7e8] sm:$0xff]
    %v308 = vld [vmem:[#allocation5 + $0x7f0] sm:$0xff]
    %v309 = vld [vmem:[#allocation5 + $0x7f8] sm:$0xff]
    %v310 = vld [vmem:[#allocation5 + $0x800] sm:$0xff]
    %v311 = vld [vmem:[#allocation5 + $0x808] sm:$0xff]
    %v312 = vld [vmem:[#allocation5 + $0x810] sm:$0xff]
    %v313 = vld [vmem:[#allocation5 + $0x818] sm:$0xff]
    %v314 = vld [vmem:[#allocation5 + $0x820] sm:$0xff]
    %v315 = vld [vmem:[#allocation5 + $0x828] sm:$0xff]
    %v316 = vld [vmem:[#allocation5 + $0x830] sm:$0xff]
    %v317 = vld [vmem:[#allocation5 + $0x838] sm:$0xff]
    %v318 = vld [vmem:[#allocation5 + $0x840] sm:$0xff]
    %v319 = vld [vmem:[#allocation5 + $0x848] sm:$0xff]
    %v320 = vld [vmem:[#allocation5 + $0x850] sm:$0xff]
    %v321 = vld [vmem:[#allocation5 + $0x858] sm:$0xff]
    %v322 = vld [vmem:[#allocation5 + $0x860] sm:$0xff]
    %v323 = vld [vmem:[#allocation5 + $0x868] sm:$0xff]
    %v324 = vld [vmem:[#allocation5 + $0x870] sm:$0xff]
    %v325 = vld [vmem:[#allocation5 + $0x878] sm:$0xff]
    %v326 = vld [vmem:[#allocation5 + $0x880] sm:$0xff]
    %v327 = vld [vmem:[#allocation5 + $0x888] sm:$0xff]
    %v328 = vld [vmem:[#allocation5 + $0x890] sm:$0xff]
    %v329 = vld [vmem:[#allocation5 + $0x898] sm:$0xff]
    %v330 = vld [vmem:[#allocation5 + $0x8a0] sm:$0xff]
    %v331 = vld [vmem:[#allocation5 + $0x8a8] sm:$0xff]
    %v332 = vld [vmem:[#allocation5 + $0x8b0] sm:$0xff]
    %v333 = vld [vmem:[#allocation5 + $0x8b8] sm:$0xff]
    %v334 = vld [vmem:[#allocation5 + $0x8c0] sm:$0xff]
    %v335 = vld [vmem:[#allocation5 + $0x8c8] sm:$0xff]
    %v336 = vld [vmem:[#allocation5 + $0x8d0] sm:$0xff]
    %v337 = vld [vmem:[#allocation5 + $0x8d8] sm:$0xff]
    %v338 = vld [vmem:[#allocation5 + $0x8e0] sm:$0xff]
    %v339 = vld [vmem:[#allocation5 + $0x8e8] sm:$0xff]
    %v340 = vld [vmem:[#allocation5 + $0x8f0] sm:$0xff]
    %v341 = vld [vmem:[#allocation5 + $0x8f8] sm:$0xff]
    %v342 = vld [vmem:[#allocation5 + $0x900] sm:$0xff]
    %v343 = vld [vmem:[#allocation5 + $0x908] sm:$0xff]
    %v344 = vld [vmem:[#allocation5 + $0x910] sm:$0xff]
    %v345 = vld [vmem:[#allocation5 + $0x918] sm:$0xff]
    %v346 = vld [vmem:[#allocation5 + $0x920] sm:$0xff]
    %v347 = vld [vmem:[#allocation5 + $0x928] sm:$0xff]
    %v348 = vld [vmem:[#allocation5 + $0x930] sm:$0xff]
    %v349 = vld [vmem:[#allocation5 + $0x938] sm:$0xff]
    %v350 = vld [vmem:[#allocation5 + $0x940] sm:$0xff]
    %v351 = vld [vmem:[#allocation5 + $0x948] sm:$0xff]
    %v352 = vld [vmem:[#allocation5 + $0x950] sm:$0xff]
    %v353 = vld [vmem:[#allocation5 + $0x958] sm:$0xff]
    %v354 = vld [vmem:[#allocation5 + $0x960] sm:$0xff]
    %v355 = vld [vmem:[#allocation5 + $0x968] sm:$0xff]
    %v356 = vld [vmem:[#allocation5 + $0x970] sm:$0xff]
    %v357 = vld [vmem:[#allocation5 + $0x978] sm:$0xff]
    %v358 = vld [vmem:[#allocation5 + $0x980] sm:$0xff]
    %v359 = vld [vmem:[#allocation5 + $0x988] sm:$0xff]
    %v360 = vld [vmem:[#allocation5 + $0x990] sm:$0xff]
    %v361 = vld [vmem:[#allocation5 + $0x998] sm:$0xff]
    %v362 = vld [vmem:[#allocation5 + $0x9a0] sm:$0xff]
    %v363 = vld [vmem:[#allocation5 + $0x9a8] sm:$0xff]
    %v364 = vld [vmem:[#allocation5 + $0x9b0] sm:$0xff]
    %v365 = vld [vmem:[#allocation5 + $0x9b8] sm:$0xff]
    %v366 = vld [vmem:[#allocation5 + $0x9c0] sm:$0xff]
    %v367 = vld [vmem:[#allocation5 + $0x9c8] sm:$0xff]
    %v368 = vld [vmem:[#allocation5 + $0x9d0] sm:$0xff]
    %v369 = vld [vmem:[#allocation5 + $0x9d8] sm:$0xff]
    %v370 = vld [vmem:[#allocation5 + $0x9e0] sm:$0xff]
    %v371 = vld [vmem:[#allocation5 + $0x9e8] sm:$0xff]
    %v372 = vld [vmem:[#allocation5 + $0x9f0] sm:$0xff]
    %v373 = vld [vmem:[#allocation5 + $0x9f8] sm:$0xff]
    %v374 = vld [vmem:[#allocation5 + $0xa00] sm:$0xff]
    %v375 = vld [vmem:[#allocation5 + $0xa08] sm:$0xff]
    %v376 = vld [vmem:[#allocation5 + $0xa10] sm:$0xff]
    %v377 = vld [vmem:[#allocation5 + $0xa18] sm:$0xff]
    %v378 = vld [vmem:[#allocation5 + $0xa20] sm:$0xff]
    %v379 = vld [vmem:[#allocation5 + $0xa28] sm:$0xff]
    %v380 = vld [vmem:[#allocation5 + $0xa30] sm:$0xff]
    %v381 = vld [vmem:[#allocation5 + $0xa38] sm:$0xff]
    %v382 = vld [vmem:[#allocation5 + $0xa40] sm:$0xff]
    %v383 = vld [vmem:[#allocation5 + $0xa48] sm:$0xff]
    %v384 = vld [vmem:[#allocation5 + $0xa50] sm:$0xff]
    %v385 = vld [vmem:[#allocation5 + $0xa58] sm:$0xff]
    %v386 = vld [vmem:[#allocation5 + $0xa60] sm:$0xff]
    %v387 = vld [vmem:[#allocation5 + $0xa68] sm:$0xff]
    %v388 = vld [vmem:[#allocation5 + $0xa70] sm:$0xff]
    %v389 = vld [vmem:[#allocation5 + $0xa78] sm:$0xff]
    %v390 = vld [vmem:[#allocation5 + $0xa80] sm:$0xff]
    %v391 = vld [vmem:[#allocation5 + $0xa88] sm:$0xff]
    %v392 = vld [vmem:[#allocation5 + $0xa90] sm:$0xff]
    %v393 = vld [vmem:[#allocation5 + $0xa98] sm:$0xff]
    %v394 = vld [vmem:[#allocation5 + $0xaa0] sm:$0xff]
    %v395 = vld [vmem:[#allocation5 + $0xaa8] sm:$0xff]
    %v396 = vld [vmem:[#allocation5 + $0xab0] sm:$0xff]
    %v397 = vld [vmem:[#allocation5 + $0xab8] sm:$0xff]
    %v398 = vld [vmem:[#allocation5 + $0xac0] sm:$0xff]
    %v399 = vld [vmem:[#allocation5 + $0xac8] sm:$0xff]
    %v400 = vld [vmem:[#allocation5 + $0xad0] sm:$0xff]
    %v401 = vld [vmem:[#allocation5 + $0xad8] sm:$0xff]
    %v402 = vld [vmem:[#allocation5 + $0xae0] sm:$0xff]
    %v403 = vld [vmem:[#allocation5 + $0xae8] sm:$0xff]
    %v404 = vld [vmem:[#allocation5 + $0xaf0] sm:$0xff]
    %v405 = vld [vmem:[#allocation5 + $0xaf8] sm:$0xff]
    %v406 = vld [vmem:[#allocation5 + $0xb00] sm:$0xff]
    %v407 = vld [vmem:[#allocation5 + $0xb08] sm:$0xff]
    %v408 = vld [vmem:[#allocation5 + $0xb10] sm:$0xff]
    %v409 = vld [vmem:[#allocation5 + $0xb18] sm:$0xff]
    %v410 = vld [vmem:[#allocation5 + $0xb20] sm:$0xff]
    %v411 = vld [vmem:[#allocation5 + $0xb28] sm:$0xff]
    %v412 = vld [vmem:[#allocation5 + $0xb30] sm:$0xff]
    %v413 = vld [vmem:[#allocation5 + $0xb38] sm:$0xff]
    %v414 = vld [vmem:[#allocation5 + $0xb40] sm:$0xff]
    %v415 = vld [vmem:[#allocation5 + $0xb48] sm:$0xff]
    %v416 = vld [vmem:[#allocation5 + $0xb50] sm:$0xff]
    %v417 = vld [vmem:[#allocation5 + $0xb58] sm:$0xff]
    %v418 = vld [vmem:[#allocation5 + $0xb60] sm:$0xff]
    %v419 = vld [vmem:[#allocation5 + $0xb68] sm:$0xff]
    %v420 = vld [vmem:[#allocation5 + $0xb70] sm:$0xff]
    %v421 = vld [vmem:[#allocation5 + $0xb78] sm:$0xff]
    %v422 = vld [vmem:[#allocation5 + $0xb80] sm:$0xff]
    %v423 = vld [vmem:[#allocation5 + $0xb88] sm:$0xff]
    %v424 = vld [vmem:[#allocation5 + $0xb90] sm:$0xff]
    %v425 = vld [vmem:[#allocation5 + $0xb98] sm:$0xff]
    %v426 = vld [vmem:[#allocation5 + $0xba0] sm:$0xff]
    %v427 = vld [vmem:[#allocation5 + $0xba8] sm:$0xff]
    %v428 = vld [vmem:[#allocation5 + $0xbb0] sm:$0xff]
    %v429 = vld [vmem:[#allocation5 + $0xbb8] sm:$0xff]
    %v430 = vld [vmem:[#allocation5 + $0xbc0] sm:$0xff]
    %v431 = vld [vmem:[#allocation5 + $0xbc8] sm:$0xff]
    %v432 = vld [vmem:[#allocation5 + $0xbd0] sm:$0xff]
    %v433 = vld [vmem:[#allocation5 + $0xbd8] sm:$0xff]
    %v434 = vld [vmem:[#allocation5 + $0xbe0] sm:$0xff]
    %v435 = vld [vmem:[#allocation5 + $0xbe8] sm:$0xff]
    %v436 = vld [vmem:[#allocation5 + $0xbf0] sm:$0xff]
    %v437 = vld [vmem:[#allocation5 + $0xbf8] sm:$0xff]
    %v440 = vunpack.c.l.b16 %v52
    %v441 = vunpack.c.h.b16 %v52
    %v442 = vunpack.c.l.b16 %v53
    %v443 = vunpack.c.h.b16 %v53
    %v444 = vpack.c.b16 %v440, %v440
    %v445 = vpack.c.b16 %v441, %v441
    %v446 = vpack.c.b16 %v442, %v442
    %v447 = vpack.c.b16 %v443, %v443
    %v836 = vunpack.c.l.b16 %v54
    %v837 = vunpack.c.h.b16 %v54
    %v838 = vunpack.c.l.b16 %v55
    %v839 = vunpack.c.h.b16 %v55
    %v840 = vunpack.c.l.b16 %v56
    %v841 = vunpack.c.h.b16 %v56
    %v842 = vunpack.c.l.b16 %v57
    %v843 = vunpack.c.h.b16 %v57
    %v844 = vunpack.c.l.b16 %v58
    %v845 = vunpack.c.h.b16 %v58
    %v846 = vunpack.c.l.b16 %v59
    %v847 = vunpack.c.h.b16 %v59
    %v848 = vunpack.c.l.b16 %v60
    %v849 = vunpack.c.h.b16 %v60
    %v850 = vunpack.c.l.b16 %v61
    %v851 = vunpack.c.h.b16 %v61
    %v852 = vunpack.c.l.b16 %v62
    %v853 = vunpack.c.h.b16 %v62
    %v854 = vunpack.c.l.b16 %v63
    %v855 = vunpack.c.h.b16 %v63
    %v856 = vunpack.c.l.b16 %v64
    %v857 = vunpack.c.h.b16 %v64
    %v858 = vunpack.c.l.b16 %v65
    %v859 = vunpack.c.h.b16 %v65
    %v860 = vunpack.c.l.b16 %v66
    %v861 = vunpack.c.h.b16 %v66
    %v862 = vunpack.c.l.b16 %v67
    %v863 = vunpack.c.h.b16 %v67
    %v864 = vunpack.c.l.b16 %v68
    %v865 = vunpack.c.h.b16 %v68
    %v866 = vunpack.c.l.b16 %v69
    %v867 = vunpack.c.h.b16 %v69
    %v868 = vunpack.c.l.b16 %v70
    %v869 = vunpack.c.h.b16 %v70
    %v870 = vunpack.c.l.b16 %v71
    %v871 = vunpack.c.h.b16 %v71
    %v872 = vunpack.c.l.b16 %v72
    %v873 = vunpack.c.h.b16 %v72
    %v874 = vunpack.c.l.b16 %v73
    %v875 = vunpack.c.h.b16 %v73
    %v876 = vunpack.c.l.b16 %v74
    %v877 = vunpack.c.h.b16 %v74
    %v878 = vunpack.c.l.b16 %v75
    %v879 = vunpack.c.h.b16 %v75
    %v880 = vunpack.c.l.b16 %v76
    %v881 = vunpack.c.h.b16 %v76
    %v882 = vunpack.c.l.b16 %v77
    %v883 = vunpack.c.h.b16 %v77
    %v884 = vunpack.c.l.b16 %v78
    %v885 = vunpack.c.h.b16 %v78
    %v886 = vunpack.c.l.b16 %v79
    %v887 = vunpack.c.h.b16 %v79
    %v888 = vunpack.c.l.b16 %v80
    %v889 = vunpack.c.h.b16 %v80
    %v890 = vunpack.c.l.b16 %v81
    %v891 = vunpack.c.h.b16 %v81
    %v892 = vunpack.c.l.b16 %v82
    %v893 = vunpack.c.h.b16 %v82
    %v894 = vunpack.c.l.b16 %v83
    %v895 = vunpack.c.h.b16 %v83
    %v896 = vunpack.c.l.b16 %v84
    %v897 = vunpack.c.h.b16 %v84
    %v898 = vunpack.c.l.b16 %v85
    %v899 = vunpack.c.h.b16 %v85
    %v900 = vunpack.c.l.b16 %v86
    %v901 = vunpack.c.h.b16 %v86
    %v902 = vunpack.c.l.b16 %v87
    %v903 = vunpack.c.h.b16 %v87
    %v904 = vunpack.c.l.b16 %v88
    %v905 = vunpack.c.h.b16 %v88
    %v906 = vunpack.c.l.b16 %v89
    %v907 = vunpack.c.h.b16 %v89
    %v908 = vunpack.c.l.b16 %v90
    %v909 = vunpack.c.h.b16 %v90
    %v910 = vunpack.c.l.b16 %v91
    %v911 = vunpack.c.h.b16 %v91
    %v912 = vunpack.c.l.b16 %v92
    %v913 = vunpack.c.h.b16 %v92
    %v914 = vunpack.c.l.b16 %v93
    %v915 = vunpack.c.h.b16 %v93
    %v916 = vunpack.c.l.b16 %v94
    %v917 = vunpack.c.h.b16 %v94
    %v918 = vunpack.c.l.b16 %v95
    %v919 = vunpack.c.h.b16 %v95
    %v920 = vunpack.c.l.b16 %v96
    %v921 = vunpack.c.h.b16 %v96
    %v922 = vunpack.c.l.b16 %v97
    %v923 = vunpack.c.h.b16 %v97
    %v924 = vunpack.c.l.b16 %v98
    %v925 = vunpack.c.h.b16 %v98
    %v926 = vunpack.c.l.b16 %v99
    %v927 = vunpack.c.h.b16 %v99
    %v928 = vunpack.c.l.b16 %v100
    %v929 = vunpack.c.h.b16 %v100
    %v930 = vunpack.c.l.b16 %v101
    %v931 = vunpack.c.h.b16 %v101
    %v932 = vunpack.c.l.b16 %v102
    %v933 = vunpack.c.h.b16 %v102
    %v934 = vunpack.c.l.b16 %v103
    %v935 = vunpack.c.h.b16 %v103
    %v936 = vunpack.c.l.b16 %v104
    %v937 = vunpack.c.h.b16 %v104
    %v938 = vunpack.c.l.b16 %v105
    %v939 = vunpack.c.h.b16 %v105
    %v940 = vunpack.c.l.b16 %v106
    %v941 = vunpack.c.h.b16 %v106
    %v942 = vunpack.c.l.b16 %v107
    %v943 = vunpack.c.h.b16 %v107
    %v944 = vunpack.c.l.b16 %v108
    %v945 = vunpack.c.h.b16 %v108
    %v946 = vunpack.c.l.b16 %v109
    %v947 = vunpack.c.h.b16 %v109
    %v948 = vunpack.c.l.b16 %v110
    %v949 = vunpack.c.h.b16 %v110
    %v950 = vunpack.c.l.b16 %v111
    %v951 = vunpack.c.h.b16 %v111
    %v952 = vunpack.c.l.b16 %v112
    %v953 = vunpack.c.h.b16 %v112
    %v954 = vunpack.c.l.b16 %v113
    %v955 = vunpack.c.h.b16 %v113
    %v956 = vunpack.c.l.b16 %v114
    %v957 = vunpack.c.h.b16 %v114
    %v958 = vunpack.c.l.b16 %v115
    %v959 = vunpack.c.h.b16 %v115
    %v960 = vunpack.c.l.b16 %v116
    %v961 = vunpack.c.h.b16 %v116
    %v962 = vunpack.c.l.b16 %v117
    %v963 = vunpack.c.h.b16 %v117
    %v964 = vunpack.c.l.b16 %v118
    %v965 = vunpack.c.h.b16 %v118
    %v966 = vunpack.c.l.b16 %v119
    %v967 = vunpack.c.h.b16 %v119
    %v968 = vunpack.c.l.b16 %v120
    %v969 = vunpack.c.h.b16 %v120
    %v970 = vunpack.c.l.b16 %v121
    %v971 = vunpack.c.h.b16 %v121
    %v972 = vunpack.c.l.b16 %v122
    %v973 = vunpack.c.h.b16 %v122
    %v974 = vunpack.c.l.b16 %v123
    %v975 = vunpack.c.h.b16 %v123
    %v976 = vunpack.c.l.b16 %v124
    %v977 = vunpack.c.h.b16 %v124
    %v978 = vunpack.c.l.b16 %v125
    %v979 = vunpack.c.h.b16 %v125
    %v980 = vunpack.c.l.b16 %v126
    %v981 = vunpack.c.h.b16 %v126
    %v982 = vunpack.c.l.b16 %v127
    %v983 = vunpack.c.h.b16 %v127
    %v984 = vunpack.c.l.b16 %v128
    %v985 = vunpack.c.h.b16 %v128
    %v986 = vunpack.c.l.b16 %v129
    %v987 = vunpack.c.h.b16 %v129
    %v988 = vunpack.c.l.b16 %v130
    %v989 = vunpack.c.h.b16 %v130
    %v990 = vunpack.c.l.b16 %v131
    %v991 = vunpack.c.h.b16 %v131
    %v992 = vunpack.c.l.b16 %v132
    %v993 = vunpack.c.h.b16 %v132
    %v994 = vunpack.c.l.b16 %v133
    %v995 = vunpack.c.h.b16 %v133
    %v996 = vunpack.c.l.b16 %v134
    %v997 = vunpack.c.h.b16 %v134
    %v998 = vunpack.c.l.b16 %v135
    %v999 = vunpack.c.h.b16 %v135
    %v1000 = vunpack.c.l.b16 %v136
    %v1001 = vunpack.c.h.b16 %v136
    %v1002 = vunpack.c.l.b16 %v137
    %v1003 = vunpack.c.h.b16 %v137
    %v1004 = vunpack.c.l.b16 %v138
    %v1005 = vunpack.c.h.b16 %v138
    %v1006 = vunpack.c.l.b16 %v139
    %v1007 = vunpack.c.h.b16 %v139
    %v1008 = vunpack.c.l.b16 %v140
    %v1009 = vunpack.c.h.b16 %v140
    %v1010 = vunpack.c.l.b16 %v141
    %v1011 = vunpack.c.h.b16 %v141
    %v1012 = vunpack.c.l.b16 %v142
    %v1013 = vunpack.c.h.b16 %v142
    %v1014 = vunpack.c.l.b16 %v143
    %v1015 = vunpack.c.h.b16 %v143
    %v1016 = vunpack.c.l.b16 %v144
    %v1017 = vunpack.c.h.b16 %v144
    %v1018 = vunpack.c.l.b16 %v145
    %v1019 = vunpack.c.h.b16 %v145
    %v1020 = vunpack.c.l.b16 %v146
    %v1021 = vunpack.c.h.b16 %v146
    %v1022 = vunpack.c.l.b16 %v147
    %v1023 = vunpack.c.h.b16 %v147
    %v1024 = vunpack.c.l.b16 %v148
    %v1025 = vunpack.c.h.b16 %v148
    %v1026 = vunpack.c.l.b16 %v149
    %v1027 = vunpack.c.h.b16 %v149
    %v1028 = vunpack.c.l.b16 %v150
    %v1029 = vunpack.c.h.b16 %v150
    %v1030 = vunpack.c.l.b16 %v151
    %v1031 = vunpack.c.h.b16 %v151
    %v1032 = vunpack.c.l.b16 %v152
    %v1033 = vunpack.c.h.b16 %v152
    %v1034 = vunpack.c.l.b16 %v153
    %v1035 = vunpack.c.h.b16 %v153
    %v1036 = vunpack.c.l.b16 %v154
    %v1037 = vunpack.c.h.b16 %v154
    %v1038 = vunpack.c.l.b16 %v155
    %v1039 = vunpack.c.h.b16 %v155
    %v1040 = vunpack.c.l.b16 %v156
    %v1041 = vunpack.c.h.b16 %v156
    %v1042 = vunpack.c.l.b16 %v157
    %v1043 = vunpack.c.h.b16 %v157
    %v1044 = vunpack.c.l.b16 %v158
    %v1045 = vunpack.c.h.b16 %v158
    %v1046 = vunpack.c.l.b16 %v159
    %v1047 = vunpack.c.h.b16 %v159
    %v1048 = vunpack.c.l.b16 %v160
    %v1049 = vunpack.c.h.b16 %v160
    %v1050 = vunpack.c.l.b16 %v161
    %v1051 = vunpack.c.h.b16 %v161
    %v1052 = vunpack.c.l.b16 %v162
    %v1053 = vunpack.c.h.b16 %v162
    %v1054 = vunpack.c.l.b16 %v163
    %v1055 = vunpack.c.h.b16 %v163
    %v1056 = vunpack.c.l.b16 %v164
    %v1057 = vunpack.c.h.b16 %v164
    %v1058 = vunpack.c.l.b16 %v165
    %v1059 = vunpack.c.h.b16 %v165
    %v1060 = vunpack.c.l.b16 %v166
    %v1061 = vunpack.c.h.b16 %v166
    %v1062 = vunpack.c.l.b16 %v167
    %v1063 = vunpack.c.h.b16 %v167
    %v1064 = vunpack.c.l.b16 %v168
    %v1065 = vunpack.c.h.b16 %v168
    %v1066 = vunpack.c.l.b16 %v169
    %v1067 = vunpack.c.h.b16 %v169
    %v1068 = vunpack.c.l.b16 %v170
    %v1069 = vunpack.c.h.b16 %v170
    %v1070 = vunpack.c.l.b16 %v171
    %v1071 = vunpack.c.h.b16 %v171
    %v1072 = vunpack.c.l.b16 %v172
    %v1073 = vunpack.c.h.b16 %v172
    %v1074 = vunpack.c.l.b16 %v173
    %v1075 = vunpack.c.h.b16 %v173
    %v1076 = vunpack.c.l.b16 %v174
    %v1077 = vunpack.c.h.b16 %v174
    %v1078 = vunpack.c.l.b16 %v175
    %v1079 = vunpack.c.h.b16 %v175
    %v1080 = vunpack.c.l.b16 %v176
    %v1081 = vunpack.c.h.b16 %v176
    %v1082 = vunpack.c.l.b16 %v177
    %v1083 = vunpack.c.h.b16 %v177
    %v1084 = vunpack.c.l.b16 %v178
    %v1085 = vunpack.c.h.b16 %v178
    %v1086 = vunpack.c.l.b16 %v179
    %v1087 = vunpack.c.h.b16 %v179
    %v1088 = vunpack.c.l.b16 %v180
    %v1089 = vunpack.c.h.b16 %v180
    %v1090 = vunpack.c.l.b16 %v181
    %v1091 = vunpack.c.h.b16 %v181
    %v1092 = vunpack.c.l.b16 %v182
    %v1093 = vunpack.c.h.b16 %v182
    %v1094 = vunpack.c.l.b16 %v183
    %v1095 = vunpack.c.h.b16 %v183
    %v1096 = vunpack.c.l.b16 %v184
    %v1097 = vunpack.c.h.b16 %v184
    %v1098 = vunpack.c.l.b16 %v185
    %v1099 = vunpack.c.h.b16 %v185
    %v1100 = vunpack.c.l.b16 %v186
    %v1101 = vunpack.c.h.b16 %v186
    %v1102 = vunpack.c.l.b16 %v187
    %v1103 = vunpack.c.h.b16 %v187
    %v1104 = vunpack.c.l.b16 %v188
    %v1105 = vunpack.c.h.b16 %v188
    %v1106 = vunpack.c.l.b16 %v189
    %v1107 = vunpack.c.h.b16 %v189
    %v1108 = vunpack.c.l.b16 %v190
    %v1109 = vunpack.c.h.b16 %v190
    %v1110 = vunpack.c.l.b16 %v191
    %v1111 = vunpack.c.h.b16 %v191
    %v1112 = vunpack.c.l.b16 %v192
    %v1113 = vunpack.c.h.b16 %v192
    %v1114 = vunpack.c.l.b16 %v193
    %v1115 = vunpack.c.h.b16 %v193
    %v1116 = vunpack.c.l.b16 %v194
    %v1117 = vunpack.c.h.b16 %v194
    %v1118 = vunpack.c.l.b16 %v195
    %v1119 = vunpack.c.h.b16 %v195
    %v1120 = vunpack.c.l.b16 %v196
    %v1121 = vunpack.c.h.b16 %v196
    %v1122 = vunpack.c.l.b16 %v197
    %v1123 = vunpack.c.h.b16 %v197
    %v1124 = vunpack.c.l.b16 %v198
    %v1125 = vunpack.c.h.b16 %v198
    %v1126 = vunpack.c.l.b16 %v199
    %v1127 = vunpack.c.h.b16 %v199
    %v1128 = vunpack.c.l.b16 %v200
    %v1129 = vunpack.c.h.b16 %v200
    %v1130 = vunpack.c.l.b16 %v201
    %v1131 = vunpack.c.h.b16 %v201
    %v1132 = vunpack.c.l.b16 %v202
    %v1133 = vunpack.c.h.b16 %v202
    %v1134 = vunpack.c.l.b16 %v203
    %v1135 = vunpack.c.h.b16 %v203
    %v1136 = vunpack.c.l.b16 %v204
    %v1137 = vunpack.c.h.b16 %v204
    %v1138 = vunpack.c.l.b16 %v205
    %v1139 = vunpack.c.h.b16 %v205
    %v1140 = vunpack.c.l.b16 %v206
    %v1141 = vunpack.c.h.b16 %v206
    %v1142 = vunpack.c.l.b16 %v207
    %v1143 = vunpack.c.h.b16 %v207
    %v1144 = vunpack.c.l.b16 %v208
    %v1145 = vunpack.c.h.b16 %v208
    %v1146 = vunpack.c.l.b16 %v209
    %v1147 = vunpack.c.h.b16 %v209
    %v1148 = vunpack.c.l.b16 %v210
    %v1149 = vunpack.c.h.b16 %v210
    %v1150 = vunpack.c.l.b16 %v211
    %v1151 = vunpack.c.h.b16 %v211
    %v1152 = vunpack.c.l.b16 %v212
    %v1153 = vunpack.c.h.b16 %v212
    %v1154 = vunpack.c.l.b16 %v213
    %v1155 = vunpack.c.h.b16 %v213
    %v1156 = vunpack.c.l.b16 %v214
    %v1157 = vunpack.c.h.b16 %v214
    %v1158 = vunpack.c.l.b16 %v215
    %v1159 = vunpack.c.h.b16 %v215
    %v1160 = vunpack.c.l.b16 %v216
    %v1161 = vunpack.c.h.b16 %v216
    %v1162 = vunpack.c.l.b16 %v217
    %v1163 = vunpack.c.h.b16 %v217
    %v1164 = vunpack.c.l.b16 %v218
    %v1165 = vunpack.c.h.b16 %v218
    %v1166 = vunpack.c.l.b16 %v219
    %v1167 = vunpack.c.h.b16 %v219
    %v1168 = vunpack.c.l.b16 %v220
    %v1169 = vunpack.c.h.b16 %v220
    %v1170 = vunpack.c.l.b16 %v221
    %v1171 = vunpack.c.h.b16 %v221
    %v1172 = vunpack.c.l.b16 %v222
    %v1173 = vunpack.c.h.b16 %v222
    %v1174 = vunpack.c.l.b16 %v223
    %v1175 = vunpack.c.h.b16 %v223
    %v1176 = vunpack.c.l.b16 %v224
    %v1177 = vunpack.c.h.b16 %v224
    %v1178 = vunpack.c.l.b16 %v225
    %v1179 = vunpack.c.h.b16 %v225
    %v1180 = vunpack.c.l.b16 %v226
    %v1181 = vunpack.c.h.b16 %v226
    %v1182 = vunpack.c.l.b16 %v227
    %v1183 = vunpack.c.h.b16 %v227
    %v1184 = vunpack.c.l.b16 %v228
    %v1185 = vunpack.c.h.b16 %v228
    %v1186 = vunpack.c.l.b16 %v229
    %v1187 = vunpack.c.h.b16 %v229
    %v1188 = vunpack.c.l.b16 %v230
    %v1189 = vunpack.c.h.b16 %v230
    %v1190 = vunpack.c.l.b16 %v231
    %v1191 = vunpack.c.h.b16 %v231
    %v1192 = vunpack.c.l.b16 %v232
    %v1193 = vunpack.c.h.b16 %v232
    %v1194 = vunpack.c.l.b16 %v233
    %v1195 = vunpack.c.h.b16 %v233
    %v1196 = vunpack.c.l.b16 %v234
    %v1197 = vunpack.c.h.b16 %v234
    %v1198 = vunpack.c.l.b16 %v235
    %v1199 = vunpack.c.h.b16 %v235
    %v1200 = vunpack.c.l.b16 %v236
    %v1201 = vunpack.c.h.b16 %v236
    %v1202 = vunpack.c.l.b16 %v237
    %v1203 = vunpack.c.h.b16 %v237
    %v1204 = vunpack.c.l.b16 %v238
    %v1205 = vunpack.c.h.b16 %v238
    %v1206 = vunpack.c.l.b16 %v239
    %v1207 = vunpack.c.h.b16 %v239
    %v1208 = vunpack.c.l.b16 %v240
    %v1209 = vunpack.c.h.b16 %v240
    %v1210 = vunpack.c.l.b16 %v241
    %v1211 = vunpack.c.h.b16 %v241
    %v1212 = vunpack.c.l.b16 %v242
    %v1213 = vunpack.c.h.b16 %v242
    %v1214 = vunpack.c.l.b16 %v243
    %v1215 = vunpack.c.h.b16 %v243
    %v1216 = vunpack.c.l.b16 %v244
    %v1217 = vunpack.c.h.b16 %v244
    %v1218 = vunpack.c.l.b16 %v245
    %v1219 = vunpack.c.h.b16 %v245
    %v1220 = vunpack.c.l.b16 %v246
    %v1221 = vunpack.c.h.b16 %v246
    %v1222 = vunpack.c.l.b16 %v247
    %v1223 = vunpack.c.h.b16 %v247
    %v1224 = vunpack.c.l.b16 %v248
    %v1225 = vunpack.c.h.b16 %v248
    %v1226 = vunpack.c.l.b16 %v249
    %v1227 = vunpack.c.h.b16 %v249
    %v1228 = vunpack.c.l.b16 %v250
    %v1229 = vunpack.c.h.b16 %v250
    %v1230 = vunpack.c.l.b16 %v251
    %v1231 = vunpack.c.h.b16 %v251
    %v1232 = vunpack.c.l.b16 %v252
    %v1233 = vunpack.c.h.b16 %v252
    %v1234 = vunpack.c.l.b16 %v253
    %v1235 = vunpack.c.h.b16 %v253
    %v1236 = vunpack.c.l.b16 %v254
    %v1237 = vunpack.c.h.b16 %v254
    %v1238 = vunpack.c.l.b16 %v255
    %v1239 = vunpack.c.h.b16 %v255
    %v1240 = vunpack.c.l.b16 %v256
    %v1241 = vunpack.c.h.b16 %v256
    %v1242 = vunpack.c.l.b16 %v257
    %v1243 = vunpack.c.h.b16 %v257
    %v1244 = vunpack.c.l.b16 %v258
    %v1245 = vunpack.c.h.b16 %v258
    %v1246 = vunpack.c.l.b16 %v259
    %v1247 = vunpack.c.h.b16 %v259
    %v1248 = vunpack.c.l.b16 %v260
    %v1249 = vunpack.c.h.b16 %v260
    %v1250 = vunpack.c.l.b16 %v261
    %v1251 = vunpack.c.h.b16 %v261
    %v1252 = vunpack.c.l.b16 %v262
    %v1253 = vunpack.c.h.b16 %v262
    %v1254 = vunpack.c.l.b16 %v263
    %v1255 = vunpack.c.h.b16 %v263
    %v1256 = vunpack.c.l.b16 %v264
    %v1257 = vunpack.c.h.b16 %v264
    %v1258 = vunpack.c.l.b16 %v265
    %v1259 = vunpack.c.h.b16 %v265
    %v1260 = vunpack.c.l.b16 %v266
    %v1261 = vunpack.c.h.b16 %v266
    %v1262 = vunpack.c.l.b16 %v267
    %v1263 = vunpack.c.h.b16 %v267
    %v1264 = vunpack.c.l.b16 %v268
    %v1265 = vunpack.c.h.b16 %v268
    %v1266 = vunpack.c.l.b16 %v269
    %v1267 = vunpack.c.h.b16 %v269
    %v1268 = vunpack.c.l.b16 %v270
    %v1269 = vunpack.c.h.b16 %v270
    %v1270 = vunpack.c.l.b16 %v271
    %v1271 = vunpack.c.h.b16 %v271
    %v1272 = vunpack.c.l.b16 %v272
    %v1273 = vunpack.c.h.b16 %v272
    %v1274 = vunpack.c.l.b16 %v273
    %v1275 = vunpack.c.h.b16 %v273
    %v1276 = vunpack.c.l.b16 %v274
    %v1277 = vunpack.c.h.b16 %v274
    %v1278 = vunpack.c.l.b16 %v275
    %v1279 = vunpack.c.h.b16 %v275
    %v1280 = vunpack.c.l.b16 %v276
    %v1281 = vunpack.c.h.b16 %v276
    %v1282 = vunpack.c.l.b16 %v277
    %v1283 = vunpack.c.h.b16 %v277
    %v1284 = vunpack.c.l.b16 %v278
    %v1285 = vunpack.c.h.b16 %v278
    %v1286 = vunpack.c.l.b16 %v279
    %v1287 = vunpack.c.h.b16 %v279
    %v1288 = vunpack.c.l.b16 %v280
    %v1289 = vunpack.c.h.b16 %v280
    %v1290 = vunpack.c.l.b16 %v281
    %v1291 = vunpack.c.h.b16 %v281
    %v1292 = vunpack.c.l.b16 %v282
    %v1293 = vunpack.c.h.b16 %v282
    %v1294 = vunpack.c.l.b16 %v283
    %v1295 = vunpack.c.h.b16 %v283
    %v1296 = vunpack.c.l.b16 %v284
    %v1297 = vunpack.c.h.b16 %v284
    %v1298 = vunpack.c.l.b16 %v285
    %v1299 = vunpack.c.h.b16 %v285
    %v1300 = vunpack.c.l.b16 %v286
    %v1301 = vunpack.c.h.b16 %v286
    %v1302 = vunpack.c.l.b16 %v287
    %v1303 = vunpack.c.h.b16 %v287
    %v1304 = vunpack.c.l.b16 %v288
    %v1305 = vunpack.c.h.b16 %v288
    %v1306 = vunpack.c.l.b16 %v289
    %v1307 = vunpack.c.h.b16 %v289
    %v1308 = vunpack.c.l.b16 %v290
    %v1309 = vunpack.c.h.b16 %v290
    %v1310 = vunpack.c.l.b16 %v291
    %v1311 = vunpack.c.h.b16 %v291
    %v1312 = vunpack.c.l.b16 %v292
    %v1313 = vunpack.c.h.b16 %v292
    %v1314 = vunpack.c.l.b16 %v293
    %v1315 = vunpack.c.h.b16 %v293
    %v1316 = vunpack.c.l.b16 %v294
    %v1317 = vunpack.c.h.b16 %v294
    %v1318 = vunpack.c.l.b16 %v295
    %v1319 = vunpack.c.h.b16 %v295
    %v1320 = vunpack.c.l.b16 %v296
    %v1321 = vunpack.c.h.b16 %v296
    %v1322 = vunpack.c.l.b16 %v297
    %v1323 = vunpack.c.h.b16 %v297
    %v1324 = vunpack.c.l.b16 %v298
    %v1325 = vunpack.c.h.b16 %v298
    %v1326 = vunpack.c.l.b16 %v299
    %v1327 = vunpack.c.h.b16 %v299
    %v1328 = vunpack.c.l.b16 %v300
    %v1329 = vunpack.c.h.b16 %v300
    %v1330 = vunpack.c.l.b16 %v301
    %v1331 = vunpack.c.h.b16 %v301
    %v1332 = vunpack.c.l.b16 %v302
    %v1333 = vunpack.c.h.b16 %v302
    %v1334 = vunpack.c.l.b16 %v303
    %v1335 = vunpack.c.h.b16 %v303
    %v1336 = vunpack.c.l.b16 %v304
    %v1337 = vunpack.c.h.b16 %v304
    %v1338 = vunpack.c.l.b16 %v305
    %v1339 = vunpack.c.h.b16 %v305
    %v1340 = vunpack.c.l.b16 %v306
    %v1341 = vunpack.c.h.b16 %v306
    %v1342 = vunpack.c.l.b16 %v307
    %v1343 = vunpack.c.h.b16 %v307
    %v1344 = vunpack.c.l.b16 %v308
    %v1345 = vunpack.c.h.b16 %v308
    %v1346 = vunpack.c.l.b16 %v309
    %v1347 = vunpack.c.h.b16 %v309
    %v1348 = vunpack.c.l.b16 %v310
    %v1349 = vunpack.c.h.b16 %v310
    %v1350 = vunpack.c.l.b16 %v311
    %v1351 = vunpack.c.h.b16 %v311
    %v1352 = vunpack.c.l.b16 %v312
    %v1353 = vunpack.c.h.b16 %v312
    %v1354 = vunpack.c.l.b16 %v313
    %v1355 = vunpack.c.h.b16 %v313
    %v1356 = vunpack.c.l.b16 %v314
    %v1357 = vunpack.c.h.b16 %v314
    %v1358 = vunpack.c.l.b16 %v315
    %v1359 = vunpack.c.h.b16 %v315
    %v1360 = vunpack.c.l.b16 %v316
    %v1361 = vunpack.c.h.b16 %v316
    %v1362 = vunpack.c.l.b16 %v317
    %v1363 = vunpack.c.h.b16 %v317
    %v1364 = vunpack.c.l.b16 %v318
    %v1365 = vunpack.c.h.b16 %v318
    %v1366 = vunpack.c.l.b16 %v319
    %v1367 = vunpack.c.h.b16 %v319
    %v1368 = vunpack.c.l.b16 %v320
    %v1369 = vunpack.c.h.b16 %v320
    %v1370 = vunpack.c.l.b16 %v321
    %v1371 = vunpack.c.h.b16 %v321
    %v1372 = vunpack.c.l.b16 %v322
    %v1373 = vunpack.c.h.b16 %v322
    %v1374 = vunpack.c.l.b16 %v323
    %v1375 = vunpack.c.h.b16 %v323
    %v1376 = vunpack.c.l.b16 %v324
    %v1377 = vunpack.c.h.b16 %v324
    %v1378 = vunpack.c.l.b16 %v325
    %v1379 = vunpack.c.h.b16 %v325
    %v1380 = vunpack.c.l.b16 %v326
    %v1381 = vunpack.c.h.b16 %v326
    %v1382 = vunpack.c.l.b16 %v327
    %v1383 = vunpack.c.h.b16 %v327
    %v1384 = vunpack.c.l.b16 %v328
    %v1385 = vunpack.c.h.b16 %v328
    %v1386 = vunpack.c.l.b16 %v329
    %v1387 = vunpack.c.h.b16 %v329
    %v1388 = vunpack.c.l.b16 %v330
    %v1389 = vunpack.c.h.b16 %v330
    %v1390 = vunpack.c.l.b16 %v331
    %v1391 = vunpack.c.h.b16 %v331
    %v1392 = vunpack.c.l.b16 %v332
    %v1393 = vunpack.c.h.b16 %v332
    %v1394 = vunpack.c.l.b16 %v333
    %v1395 = vunpack.c.h.b16 %v333
    %v1396 = vunpack.c.l.b16 %v334
    %v1397 = vunpack.c.h.b16 %v334
    %v1398 = vunpack.c.l.b16 %v335
    %v1399 = vunpack.c.h.b16 %v335
    %v1400 = vunpack.c.l.b16 %v336
    %v1401 = vunpack.c.h.b16 %v336
    %v1402 = vunpack.c.l.b16 %v337
    %v1403 = vunpack.c.h.b16 %v337
    %v1404 = vunpack.c.l.b16 %v338
    %v1405 = vunpack.c.h.b16 %v338
    %v1406 = vunpack.c.l.b16 %v339
    %v1407 = vunpack.c.h.b16 %v339
    %v1408 = vunpack.c.l.b16 %v340
    %v1409 = vunpack.c.h.b16 %v340
    %v1410 = vunpack.c.l.b16 %v341
    %v1411 = vunpack.c.h.b16 %v341
    %v1412 = vunpack.c.l.b16 %v342
    %v1413 = vunpack.c.h.b16 %v342
    %v1414 = vunpack.c.l.b16 %v343
    %v1415 = vunpack.c.h.b16 %v343
    %v1416 = vunpack.c.l.b16 %v344
    %v1417 = vunpack.c.h.b16 %v344
    %v1418 = vunpack.c.l.b16 %v345
    %v1419 = vunpack.c.h.b16 %v345
    %v1420 = vunpack.c.l.b16 %v346
    %v1421 = vunpack.c.h.b16 %v346
    %v1422 = vunpack.c.l.b16 %v347
    %v1423 = vunpack.c.h.b16 %v347
    %v1424 = vunpack.c.l.b16 %v348
    %v1425 = vunpack.c.h.b16 %v348
    %v1426 = vunpack.c.l.b16 %v349
    %v1427 = vunpack.c.h.b16 %v349
    %v1428 = vunpack.c.l.b16 %v350
    %v1429 = vunpack.c.h.b16 %v350
    %v1430 = vunpack.c.l.b16 %v351
    %v1431 = vunpack.c.h.b16 %v351
    %v1432 = vunpack.c.l.b16 %v352
    %v1433 = vunpack.c.h.b16 %v352
    %v1434 = vunpack.c.l.b16 %v353
    %v1435 = vunpack.c.h.b16 %v353
    %v1436 = vunpack.c.l.b16 %v354
    %v1437 = vunpack.c.h.b16 %v354
    %v1438 = vunpack.c.l.b16 %v355
    %v1439 = vunpack.c.h.b16 %v355
    %v1440 = vunpack.c.l.b16 %v356
    %v1441 = vunpack.c.h.b16 %v356
    %v1442 = vunpack.c.l.b16 %v357
    %v1443 = vunpack.c.h.b16 %v357
    %v1444 = vunpack.c.l.b16 %v358
    %v1445 = vunpack.c.h.b16 %v358
    %v1446 = vunpack.c.l.b16 %v359
    %v1447 = vunpack.c.h.b16 %v359
    %v1448 = vunpack.c.l.b16 %v360
    %v1449 = vunpack.c.h.b16 %v360
    %v1450 = vunpack.c.l.b16 %v361
    %v1451 = vunpack.c.h.b16 %v361
    %v1452 = vunpack.c.l.b16 %v362
    %v1453 = vunpack.c.h.b16 %v362
    %v1454 = vunpack.c.l.b16 %v363
    %v1455 = vunpack.c.h.b16 %v363
    %v1456 = vunpack.c.l.b16 %v364
    %v1457 = vunpack.c.h.b16 %v364
    %v1458 = vunpack.c.l.b16 %v365
    %v1459 = vunpack.c.h.b16 %v365
    %v1460 = vunpack.c.l.b16 %v366
    %v1461 = vunpack.c.h.b16 %v366
    %v1462 = vunpack.c.l.b16 %v367
    %v1463 = vunpack.c.h.b16 %v367
    %v1464 = vunpack.c.l.b16 %v368
    %v1465 = vunpack.c.h.b16 %v368
    %v1466 = vunpack.c.l.b16 %v369
    %v1467 = vunpack.c.h.b16 %v369
    %v1468 = vunpack.c.l.b16 %v370
    %v1469 = vunpack.c.h.b16 %v370
    %v1470 = vunpack.c.l.b16 %v371
    %v1471 = vunpack.c.h.b16 %v371
    %v1472 = vunpack.c.l.b16 %v372
    %v1473 = vunpack.c.h.b16 %v372
    %v1474 = vunpack.c.l.b16 %v373
    %v1475 = vunpack.c.h.b16 %v373
    %v1476 = vunpack.c.l.b16 %v374
    %v1477 = vunpack.c.h.b16 %v374
    %v1478 = vunpack.c.l.b16 %v375
    %v1479 = vunpack.c.h.b16 %v375
    %v1480 = vunpack.c.l.b16 %v376
    %v1481 = vunpack.c.h.b16 %v376
    %v1482 = vunpack.c.l.b16 %v377
    %v1483 = vunpack.c.h.b16 %v377
    %v1484 = vunpack.c.l.b16 %v378
    %v1485 = vunpack.c.h.b16 %v378
    %v1486 = vunpack.c.l.b16 %v379
    %v1487 = vunpack.c.h.b16 %v379
    %v1488 = vunpack.c.l.b16 %v380
    %v1489 = vunpack.c.h.b16 %v380
    %v1490 = vunpack.c.l.b16 %v381
    %v1491 = vunpack.c.h.b16 %v381
    %v1492 = vunpack.c.l.b16 %v382
    %v1493 = vunpack.c.h.b16 %v382
    %v1494 = vunpack.c.l.b16 %v383
    %v1495 = vunpack.c.h.b16 %v383
    %v1496 = vunpack.c.l.b16 %v384
    %v1497 = vunpack.c.h.b16 %v384
    %v1498 = vunpack.c.l.b16 %v385
    %v1499 = vunpack.c.h.b16 %v385
    %v1500 = vunpack.c.l.b16 %v386
    %v1501 = vunpack.c.h.b16 %v386
    %v1502 = vunpack.c.l.b16 %v387
    %v1503 = vunpack.c.h.b16 %v387
    %v1504 = vunpack.c.l.b16 %v388
    %v1505 = vunpack.c.h.b16 %v388
    %v1506 = vunpack.c.l.b16 %v389
    %v1507 = vunpack.c.h.b16 %v389
    %v1508 = vunpack.c.l.b16 %v390
    %v1509 = vunpack.c.h.b16 %v390
    %v1510 = vunpack.c.l.b16 %v391
    %v1511 = vunpack.c.h.b16 %v391
    %v1512 = vunpack.c.l.b16 %v392
    %v1513 = vunpack.c.h.b16 %v392
    %v1514 = vunpack.c.l.b16 %v393
    %v1515 = vunpack.c.h.b16 %v393
    %v1516 = vunpack.c.l.b16 %v394
    %v1517 = vunpack.c.h.b16 %v394
    %v1518 = vunpack.c.l.b16 %v395
    %v1519 = vunpack.c.h.b16 %v395
    %v1520 = vunpack.c.l.b16 %v396
    %v1521 = vunpack.c.h.b16 %v396
    %v1522 = vunpack.c.l.b16 %v397
    %v1523 = vunpack.c.h.b16 %v397
    %v1524 = vunpack.c.l.b16 %v398
    %v1525 = vunpack.c.h.b16 %v398
    %v1526 = vunpack.c.l.b16 %v399
    %v1527 = vunpack.c.h.b16 %v399
    %v1528 = vunpack.c.l.b16 %v400
    %v1529 = vunpack.c.h.b16 %v400
    %v1530 = vunpack.c.l.b16 %v401
    %v1531 = vunpack.c.h.b16 %v401
    %v1532 = vunpack.c.l.b16 %v402
    %v1533 = vunpack.c.h.b16 %v402
    %v1534 = vunpack.c.l.b16 %v403
    %v1535 = vunpack.c.h.b16 %v403
    %v1536 = vunpack.c.l.b16 %v404
    %v1537 = vunpack.c.h.b16 %v404
    %v1538 = vunpack.c.l.b16 %v405
    %v1539 = vunpack.c.h.b16 %v405
    %v1540 = vunpack.c.l.b16 %v406
    %v1541 = vunpack.c.h.b16 %v406
    %v1542 = vunpack.c.l.b16 %v407
    %v1543 = vunpack.c.h.b16 %v407
    %v1544 = vunpack.c.l.b16 %v408
    %v1545 = vunpack.c.h.b16 %v408
    %v1546 = vunpack.c.l.b16 %v409
    %v1547 = vunpack.c.h.b16 %v409
    %v1548 = vunpack.c.l.b16 %v410
    %v1549 = vunpack.c.h.b16 %v410
    %v1550 = vunpack.c.l.b16 %v411
    %v1551 = vunpack.c.h.b16 %v411
    %v1552 = vunpack.c.l.b16 %v412
    %v1553 = vunpack.c.h.b16 %v412
    %v1554 = vunpack.c.l.b16 %v413
    %v1555 = vunpack.c.h.b16 %v413
    %v1556 = vunpack.c.l.b16 %v414
    %v1557 = vunpack.c.h.b16 %v414
    %v1558 = vunpack.c.l.b16 %v415
    %v1559 = vunpack.c.h.b16 %v415
    %v1560 = vunpack.c.l.b16 %v416
    %v1561 = vunpack.c.h.b16 %v416
    %v1562 = vunpack.c.l.b16 %v417
    %v1563 = vunpack.c.h.b16 %v417
    %v1564 = vunpack.c.l.b16 %v418
    %v1565 = vunpack.c.h.b16 %v418
    %v1566 = vunpack.c.l.b16 %v419
    %v1567 = vunpack.c.h.b16 %v419
    %v1568 = vunpack.c.l.b16 %v420
    %v1569 = vunpack.c.h.b16 %v420
    %v1570 = vunpack.c.l.b16 %v421
    %v1571 = vunpack.c.h.b16 %v421
    %v1572 = vunpack.c.l.b16 %v422
    %v1573 = vunpack.c.h.b16 %v422
    %v1574 = vunpack.c.l.b16 %v423
    %v1575 = vunpack.c.h.b16 %v423
    %v1576 = vunpack.c.l.b16 %v424
    %v1577 = vunpack.c.h.b16 %v424
    %v1578 = vunpack.c.l.b16 %v425
    %v1579 = vunpack.c.h.b16 %v425
    %v1580 = vunpack.c.l.b16 %v426
    %v1581 = vunpack.c.h.b16 %v426
    %v1582 = vunpack.c.l.b16 %v427
    %v1583 = vunpack.c.h.b16 %v427
    %v1584 = vunpack.c.l.b16 %v428
    %v1585 = vunpack.c.h.b16 %v428
    %v1586 = vunpack.c.l.b16 %v429
    %v1587 = vunpack.c.h.b16 %v429
    %v1588 = vunpack.c.l.b16 %v430
    %v1589 = vunpack.c.h.b16 %v430
    %v1590 = vunpack.c.l.b16 %v431
    %v1591 = vunpack.c.h.b16 %v431
    %v1592 = vunpack.c.l.b16 %v432
    %v1593 = vunpack.c.h.b16 %v432
    %v1594 = vunpack.c.l.b16 %v433
    %v1595 = vunpack.c.h.b16 %v433
    %v1596 = vunpack.c.l.b16 %v434
    %v1597 = vunpack.c.h.b16 %v434
    %v1598 = vunpack.c.l.b16 %v435
    %v1599 = vunpack.c.h.b16 %v435
    %v1600 = vunpack.c.l.b16 %v436
    %v1601 = vunpack.c.h.b16 %v436
    %v1602 = vunpack.c.l.b16 %v437
    %v1603 = vunpack.c.h.b16 %v437
    %v1604 = vpack.c.b16 %v848, %v836
    %v1605 = vpack.c.b16 %v849, %v837
    %v1606 = vpack.c.b16 %v850, %v838
    %v1607 = vpack.c.b16 %v851, %v839
    %v1608 = vpack.c.b16 %v852, %v840
    %v1609 = vpack.c.b16 %v853, %v841
    %v1610 = vpack.c.b16 %v854, %v842
    %v1611 = vpack.c.b16 %v855, %v843
    %v1612 = vpack.c.b16 %v856, %v844
    %v1613 = vpack.c.b16 %v857, %v845
    %v1614 = vpack.c.b16 %v858, %v846
    %v1615 = vpack.c.b16 %v859, %v847
    %v1616 = vpack.c.b16 %v872, %v860
    %v1617 = vpack.c.b16 %v873, %v861
    %v1618 = vpack.c.b16 %v874, %v862
    %v1619 = vpack.c.b16 %v875, %v863
    %v1620 = vpack.c.b16 %v876, %v864
    %v1621 = vpack.c.b16 %v877, %v865
    %v1622 = vpack.c.b16 %v878, %v866
    %v1623 = vpack.c.b16 %v879, %v867
    %v1624 = vpack.c.b16 %v880, %v868
    %v1625 = vpack.c.b16 %v881, %v869
    %v1626 = vpack.c.b16 %v882, %v870
    %v1627 = vpack.c.b16 %v883, %v871
    %v1628 = vpack.c.b16 %v896, %v884
    %v1629 = vpack.c.b16 %v897, %v885
    %v1630 = vpack.c.b16 %v898, %v886
    %v1631 = vpack.c.b16 %v899, %v887
    %v1632 = vpack.c.b16 %v900, %v888
    %v1633 = vpack.c.b16 %v901, %v889
    %v1634 = vpack.c.b16 %v902, %v890
    %v1635 = vpack.c.b16 %v903, %v891
    %v1636 = vpack.c.b16 %v904, %v892
    %v1637 = vpack.c.b16 %v905, %v893
    %v1638 = vpack.c.b16 %v906, %v894
    %v1639 = vpack.c.b16 %v907, %v895
    %v1640 = vpack.c.b16 %v920, %v908
    %v1641 = vpack.c.b16 %v921, %v909
    %v1642 = vpack.c.b16 %v922, %v910
    %v1643 = vpack.c.b16 %v923, %v911
    %v1644 = vpack.c.b16 %v924, %v912
    %v1645 = vpack.c.b16 %v925, %v913
    %v1646 = vpack.c.b16 %v926, %v914
    %v1647 = vpack.c.b16 %v927, %v915
    %v1648 = vpack.c.b16 %v928, %v916
    %v1649 = vpack.c.b16 %v929, %v917
    %v1650 = vpack.c.b16 %v930, %v918
    %v1651 = vpack.c.b16 %v931, %v919
    %v1652 = vpack.c.b16 %v944, %v932
    %v1653 = vpack.c.b16 %v945, %v933
    %v1654 = vpack.c.b16 %v946, %v934
    %v1655 = vpack.c.b16 %v947, %v935
    %v1656 = vpack.c.b16 %v948, %v936
    %v1657 = vpack.c.b16 %v949, %v937
    %v1658 = vpack.c.b16 %v950, %v938
    %v1659 = vpack.c.b16 %v951, %v939
    %v1660 = vpack.c.b16 %v952, %v940
    %v1661 = vpack.c.b16 %v953, %v941
    %v1662 = vpack.c.b16 %v954, %v942
    %v1663 = vpack.c.b16 %v955, %v943
    %v1664 = vpack.c.b16 %v968, %v956
    %v1665 = vpack.c.b16 %v969, %v957
    %v1666 = vpack.c.b16 %v970, %v958
    %v1667 = vpack.c.b16 %v971, %v959
    %v1668 = vpack.c.b16 %v972, %v960
    %v1669 = vpack.c.b16 %v973, %v961
    %v1670 = vpack.c.b16 %v974, %v962
    %v1671 = vpack.c.b16 %v975, %v963
    %v1672 = vpack.c.b16 %v976, %v964
    %v1673 = vpack.c.b16 %v977, %v965
    %v1674 = vpack.c.b16 %v978, %v966
    %v1675 = vpack.c.b16 %v979, %v967
    %v1676 = vpack.c.b16 %v992, %v980
    %v1677 = vpack.c.b16 %v993, %v981
    %v1678 = vpack.c.b16 %v994, %v982
    %v1679 = vpack.c.b16 %v995, %v983
    %v1680 = vpack.c.b16 %v996, %v984
    %v1681 = vpack.c.b16 %v997, %v985
    %v1682 = vpack.c.b16 %v998, %v986
    %v1683 = vpack.c.b16 %v999, %v987
    %v1684 = vpack.c.b16 %v1000, %v988
    %v1685 = vpack.c.b16 %v1001, %v989
    %v1686 = vpack.c.b16 %v1002, %v990
    %v1687 = vpack.c.b16 %v1003, %v991
    %v1688 = vpack.c.b16 %v1016, %v1004
    %v1689 = vpack.c.b16 %v1017, %v1005
    %v1690 = vpack.c.b16 %v1018, %v1006
    %v1691 = vpack.c.b16 %v1019, %v1007
    %v1692 = vpack.c.b16 %v1020, %v1008
    %v1693 = vpack.c.b16 %v1021, %v1009
    %v1694 = vpack.c.b16 %v1022, %v1010
    %v1695 = vpack.c.b16 %v1023, %v1011
    %v1696 = vpack.c.b16 %v1024, %v1012
    %v1697 = vpack.c.b16 %v1025, %v1013
    %v1698 = vpack.c.b16 %v1026, %v1014
    %v1699 = vpack.c.b16 %v1027, %v1015
    %v1700 = vpack.c.b16 %v1040, %v1028
    %v1701 = vpack.c.b16 %v1041, %v1029
    %v1702 = vpack.c.b16 %v1042, %v1030
    %v1703 = vpack.c.b16 %v1043, %v1031
    %v1704 = vpack.c.b16 %v1044, %v1032
    %v1705 = vpack.c.b16 %v1045, %v1033
    %v1706 = vpack.c.b16 %v1046, %v1034
    %v1707 = vpack.c.b16 %v1047, %v1035
    %v1708 = vpack.c.b16 %v1048, %v1036
    %v1709 = vpack.c.b16 %v1049, %v1037
    %v1710 = vpack.c.b16 %v1050, %v1038
    %v1711 = vpack.c.b16 %v1051, %v1039
    %v1712 = vpack.c.b16 %v1064, %v1052
    %v1713 = vpack.c.b16 %v1065, %v1053
    %v1714 = vpack.c.b16 %v1066, %v1054
    %v1715 = vpack.c.b16 %v1067, %v1055
    %v1716 = vpack.c.b16 %v1068, %v1056
    %v1717 = vpack.c.b16 %v1069, %v1057
    %v1718 = vpack.c.b16 %v1070, %v1058
    %v1719 = vpack.c.b16 %v1071, %v1059
    %v1720 = vpack.c.b16 %v1072, %v1060
    %v1721 = vpack.c.b16 %v1073, %v1061
    %v1722 = vpack.c.b16 %v1074, %v1062
    %v1723 = vpack.c.b16 %v1075, %v1063
    %v1724 = vpack.c.b16 %v1088, %v1076
    %v1725 = vpack.c.b16 %v1089, %v1077
    %v1726 = vpack.c.b16 %v1090, %v1078
    %v1727 = vpack.c.b16 %v1091, %v1079
    %v1728 = vpack.c.b16 %v1092, %v1080
    %v1729 = vpack.c.b16 %v1093, %v1081
    %v1730 = vpack.c.b16 %v1094, %v1082
    %v1731 = vpack.c.b16 %v1095, %v1083
    %v1732 = vpack.c.b16 %v1096, %v1084
    %v1733 = vpack.c.b16 %v1097, %v1085
    %v1734 = vpack.c.b16 %v1098, %v1086
    %v1735 = vpack.c.b16 %v1099, %v1087
    %v1736 = vpack.c.b16 %v1112, %v1100
    %v1737 = vpack.c.b16 %v1113, %v1101
    %v1738 = vpack.c.b16 %v1114, %v1102
    %v1739 = vpack.c.b16 %v1115, %v1103
    %v1740 = vpack.c.b16 %v1116, %v1104
    %v1741 = vpack.c.b16 %v1117, %v1105
    %v1742 = vpack.c.b16 %v1118, %v1106
    %v1743 = vpack.c.b16 %v1119, %v1107
    %v1744 = vpack.c.b16 %v1120, %v1108
    %v1745 = vpack.c.b16 %v1121, %v1109
    %v1746 = vpack.c.b16 %v1122, %v1110
    %v1747 = vpack.c.b16 %v1123, %v1111
    %v1748 = vpack.c.b16 %v1136, %v1124
    %v1749 = vpack.c.b16 %v1137, %v1125
    %v1750 = vpack.c.b16 %v1138, %v1126
    %v1751 = vpack.c.b16 %v1139, %v1127
    %v1752 = vpack.c.b16 %v1140, %v1128
    %v1753 = vpack.c.b16 %v1141, %v1129
    %v1754 = vpack.c.b16 %v1142, %v1130
    %v1755 = vpack.c.b16 %v1143, %v1131
    %v1756 = vpack.c.b16 %v1144, %v1132
    %v1757 = vpack.c.b16 %v1145, %v1133
    %v1758 = vpack.c.b16 %v1146, %v1134
    %v1759 = vpack.c.b16 %v1147, %v1135
    %v1760 = vpack.c.b16 %v1160, %v1148
    %v1761 = vpack.c.b16 %v1161, %v1149
    %v1762 = vpack.c.b16 %v1162, %v1150
    %v1763 = vpack.c.b16 %v1163, %v1151
    %v1764 = vpack.c.b16 %v1164, %v1152
    %v1765 = vpack.c.b16 %v1165, %v1153
    %v1766 = vpack.c.b16 %v1166, %v1154
    %v1767 = vpack.c.b16 %v1167, %v1155
    %v1768 = vpack.c.b16 %v1168, %v1156
    %v1769 = vpack.c.b16 %v1169, %v1157
    %v1770 = vpack.c.b16 %v1170, %v1158
    %v1771 = vpack.c.b16 %v1171, %v1159
    %v1772 = vpack.c.b16 %v1184, %v1172
    %v1773 = vpack.c.b16 %v1185, %v1173
    %v1774 = vpack.c.b16 %v1186, %v1174
    %v1775 = vpack.c.b16 %v1187, %v1175
    %v1776 = vpack.c.b16 %v1188, %v1176
    %v1777 = vpack.c.b16 %v1189, %v1177
    %v1778 = vpack.c.b16 %v1190, %v1178
    %v1779 = vpack.c.b16 %v1191, %v1179
    %v1780 = vpack.c.b16 %v1192, %v1180
    %v1781 = vpack.c.b16 %v1193, %v1181
    %v1782 = vpack.c.b16 %v1194, %v1182
    %v1783 = vpack.c.b16 %v1195, %v1183
    %v1784 = vpack.c.b16 %v1208, %v1196
    %v1785 = vpack.c.b16 %v1209, %v1197
    %v1786 = vpack.c.b16 %v1210, %v1198
    %v1787 = vpack.c.b16 %v1211, %v1199
    %v1788 = vpack.c.b16 %v1212, %v1200
    %v1789 = vpack.c.b16 %v1213, %v1201
    %v1790 = vpack.c.b16 %v1214, %v1202
    %v1791 = vpack.c.b16 %v1215, %v1203
    %v1792 = vpack.c.b16 %v1216, %v1204
    %v1793 = vpack.c.b16 %v1217, %v1205
    %v1794 = vpack.c.b16 %v1218, %v1206
    %v1795 = vpack.c.b16 %v1219, %v1207
    %v1796 = vpack.c.b16 %v1232, %v1220
    %v1797 = vpack.c.b16 %v1233, %v1221
    %v1798 = vpack.c.b16 %v1234, %v1222
    %v1799 = vpack.c.b16 %v1235, %v1223
    %v1800 = vpack.c.b16 %v1236, %v1224
    %v1801 = vpack.c.b16 %v1237, %v1225
    %v1802 = vpack.c.b16 %v1238, %v1226
    %v1803 = vpack.c.b16 %v1239, %v1227
    %v1804 = vpack.c.b16 %v1240, %v1228
    %v1805 = vpack.c.b16 %v1241, %v1229
    %v1806 = vpack.c.b16 %v1242, %v1230
    %v1807 = vpack.c.b16 %v1243, %v1231
    %v1808 = vpack.c.b16 %v1256, %v1244
    %v1809 = vpack.c.b16 %v1257, %v1245
    %v1810 = vpack.c.b16 %v1258, %v1246
    %v1811 = vpack.c.b16 %v1259, %v1247
    %v1812 = vpack.c.b16 %v1260, %v1248
    %v1813 = vpack.c.b16 %v1261, %v1249
    %v1814 = vpack.c.b16 %v1262, %v1250
    %v1815 = vpack.c.b16 %v1263, %v1251
    %v1816 = vpack.c.b16 %v1264, %v1252
    %v1817 = vpack.c.b16 %v1265, %v1253
    %v1818 = vpack.c.b16 %v1266, %v1254
    %v1819 = vpack.c.b16 %v1267, %v1255
    %v1820 = vpack.c.b16 %v1280, %v1268
    %v1821 = vpack.c.b16 %v1281, %v1269
    %v1822 = vpack.c.b16 %v1282, %v1270
    %v1823 = vpack.c.b16 %v1283, %v1271
    %v1824 = vpack.c.b16 %v1284, %v1272
    %v1825 = vpack.c.b16 %v1285, %v1273
    %v1826 = vpack.c.b16 %v1286, %v1274
    %v1827 = vpack.c.b16 %v1287, %v1275
    %v1828 = vpack.c.b16 %v1288, %v1276
    %v1829 = vpack.c.b16 %v1289, %v1277
    %v1830 = vpack.c.b16 %v1290, %v1278
    %v1831 = vpack.c.b16 %v1291, %v1279
    %v1832 = vpack.c.b16 %v1304, %v1292
    %v1833 = vpack.c.b16 %v1305, %v1293
    %v1834 = vpack.c.b16 %v1306, %v1294
    %v1835 = vpack.c.b16 %v1307, %v1295
    %v1836 = vpack.c.b16 %v1308, %v1296
    %v1837 = vpack.c.b16 %v1309, %v1297
    %v1838 = vpack.c.b16 %v1310, %v1298
    %v1839 = vpack.c.b16 %v1311, %v1299
    %v1840 = vpack.c.b16 %v1312, %v1300
    %v1841 = vpack.c.b16 %v1313, %v1301
    %v1842 = vpack.c.b16 %v1314, %v1302
    %v1843 = vpack.c.b16 %v1315, %v1303
    %v1844 = vpack.c.b16 %v1328, %v1316
    %v1845 = vpack.c.b16 %v1329, %v1317
    %v1846 = vpack.c.b16 %v1330, %v1318
    %v1847 = vpack.c.b16 %v1331, %v1319
    %v1848 = vpack.c.b16 %v1332, %v1320
    %v1849 = vpack.c.b16 %v1333, %v1321
    %v1850 = vpack.c.b16 %v1334, %v1322
    %v1851 = vpack.c.b16 %v1335, %v1323
    %v1852 = vpack.c.b16 %v1336, %v1324
    %v1853 = vpack.c.b16 %v1337, %v1325
    %v1854 = vpack.c.b16 %v1338, %v1326
    %v1855 = vpack.c.b16 %v1339, %v1327
    %v1856 = vpack.c.b16 %v1352, %v1340
    %v1857 = vpack.c.b16 %v1353, %v1341
    %v1858 = vpack.c.b16 %v1354, %v1342
    %v1859 = vpack.c.b16 %v1355, %v1343
    %v1860 = vpack.c.b16 %v1356, %v1344
    %v1861 = vpack.c.b16 %v1357, %v1345
    %v1862 = vpack.c.b16 %v1358, %v1346
    %v1863 = vpack.c.b16 %v1359, %v1347
    %v1864 = vpack.c.b16 %v1360, %v1348
    %v1865 = vpack.c.b16 %v1361, %v1349
    %v1866 = vpack.c.b16 %v1362, %v1350
    %v1867 = vpack.c.b16 %v1363, %v1351
    %v1868 = vpack.c.b16 %v1376, %v1364
    %v1869 = vpack.c.b16 %v1377, %v1365
    %v1870 = vpack.c.b16 %v1378, %v1366
    %v1871 = vpack.c.b16 %v1379, %v1367
    %v1872 = vpack.c.b16 %v1380, %v1368
    %v1873 = vpack.c.b16 %v1381, %v1369
    %v1874 = vpack.c.b16 %v1382, %v1370
    %v1875 = vpack.c.b16 %v1383, %v1371
    %v1876 = vpack.c.b16 %v1384, %v1372
    %v1877 = vpack.c.b16 %v1385, %v1373
    %v1878 = vpack.c.b16 %v1386, %v1374
    %v1879 = vpack.c.b16 %v1387, %v1375
    %v1880 = vpack.c.b16 %v1400, %v1388
    %v1881 = vpack.c.b16 %v1401, %v1389
    %v1882 = vpack.c.b16 %v1402, %v1390
    %v1883 = vpack.c.b16 %v1403, %v1391
    %v1884 = vpack.c.b16 %v1404, %v1392
    %v1885 = vpack.c.b16 %v1405, %v1393
    %v1886 = vpack.c.b16 %v1406, %v1394
    %v1887 = vpack.c.b16 %v1407, %v1395
    %v1888 = vpack.c.b16 %v1408, %v1396
    %v1889 = vpack.c.b16 %v1409, %v1397
    %v1890 = vpack.c.b16 %v1410, %v1398
    %v1891 = vpack.c.b16 %v1411, %v1399
    %v1892 = vpack.c.b16 %v1424, %v1412
    %v1893 = vpack.c.b16 %v1425, %v1413
    %v1894 = vpack.c.b16 %v1426, %v1414
    %v1895 = vpack.c.b16 %v1427, %v1415
    %v1896 = vpack.c.b16 %v1428, %v1416
    %v1897 = vpack.c.b16 %v1429, %v1417
    %v1898 = vpack.c.b16 %v1430, %v1418
    %v1899 = vpack.c.b16 %v1431, %v1419
    %v1900 = vpack.c.b16 %v1432, %v1420
    %v1901 = vpack.c.b16 %v1433, %v1421
    %v1902 = vpack.c.b16 %v1434, %v1422
    %v1903 = vpack.c.b16 %v1435, %v1423
    %v1904 = vpack.c.b16 %v1448, %v1436
    %v1905 = vpack.c.b16 %v1449, %v1437
    %v1906 = vpack.c.b16 %v1450, %v1438
    %v1907 = vpack.c.b16 %v1451, %v1439
    %v1908 = vpack.c.b16 %v1452, %v1440
    %v1909 = vpack.c.b16 %v1453, %v1441
    %v1910 = vpack.c.b16 %v1454, %v1442
    %v1911 = vpack.c.b16 %v1455, %v1443
    %v1912 = vpack.c.b16 %v1456, %v1444
    %v1913 = vpack.c.b16 %v1457, %v1445
    %v1914 = vpack.c.b16 %v1458, %v1446
    %v1915 = vpack.c.b16 %v1459, %v1447
    %v1916 = vpack.c.b16 %v1472, %v1460
    %v1917 = vpack.c.b16 %v1473, %v1461
    %v1918 = vpack.c.b16 %v1474, %v1462
    %v1919 = vpack.c.b16 %v1475, %v1463
    %v1920 = vpack.c.b16 %v1476, %v1464
    %v1921 = vpack.c.b16 %v1477, %v1465
    %v1922 = vpack.c.b16 %v1478, %v1466
    %v1923 = vpack.c.b16 %v1479, %v1467
    %v1924 = vpack.c.b16 %v1480, %v1468
    %v1925 = vpack.c.b16 %v1481, %v1469
    %v1926 = vpack.c.b16 %v1482, %v1470
    %v1927 = vpack.c.b16 %v1483, %v1471
    %v1928 = vpack.c.b16 %v1496, %v1484
    %v1929 = vpack.c.b16 %v1497, %v1485
    %v1930 = vpack.c.b16 %v1498, %v1486
    %v1931 = vpack.c.b16 %v1499, %v1487
    %v1932 = vpack.c.b16 %v1500, %v1488
    %v1933 = vpack.c.b16 %v1501, %v1489
    %v1934 = vpack.c.b16 %v1502, %v1490
    %v1935 = vpack.c.b16 %v1503, %v1491
    %v1936 = vpack.c.b16 %v1504, %v1492
    %v1937 = vpack.c.b16 %v1505, %v1493
    %v1938 = vpack.c.b16 %v1506, %v1494
    %v1939 = vpack.c.b16 %v1507, %v1495
    %v1940 = vpack.c.b16 %v1520, %v1508
    %v1941 = vpack.c.b16 %v1521, %v1509
    %v1942 = vpack.c.b16 %v1522, %v1510
    %v1943 = vpack.c.b16 %v1523, %v1511
    %v1944 = vpack.c.b16 %v1524, %v1512
    %v1945 = vpack.c.b16 %v1525, %v1513
    %v1946 = vpack.c.b16 %v1526, %v1514
    %v1947 = vpack.c.b16 %v1527, %v1515
    %v1948 = vpack.c.b16 %v1528, %v1516
    %v1949 = vpack.c.b16 %v1529, %v1517
    %v1950 = vpack.c.b16 %v1530, %v1518
    %v1951 = vpack.c.b16 %v1531, %v1519
    %v1952 = vpack.c.b16 %v1544, %v1532
    %v1953 = vpack.c.b16 %v1545, %v1533
    %v1954 = vpack.c.b16 %v1546, %v1534
    %v1955 = vpack.c.b16 %v1547, %v1535
    %v1956 = vpack.c.b16 %v1548, %v1536
    %v1957 = vpack.c.b16 %v1549, %v1537
    %v1958 = vpack.c.b16 %v1550, %v1538
    %v1959 = vpack.c.b16 %v1551, %v1539
    %v1960 = vpack.c.b16 %v1552, %v1540
    %v1961 = vpack.c.b16 %v1553, %v1541
    %v1962 = vpack.c.b16 %v1554, %v1542
    %v1963 = vpack.c.b16 %v1555, %v1543
    %v1964 = vpack.c.b16 %v1568, %v1556
    %v1965 = vpack.c.b16 %v1569, %v1557
    %v1966 = vpack.c.b16 %v1570, %v1558
    %v1967 = vpack.c.b16 %v1571, %v1559
    %v1968 = vpack.c.b16 %v1572, %v1560
    %v1969 = vpack.c.b16 %v1573, %v1561
    %v1970 = vpack.c.b16 %v1574, %v1562
    %v1971 = vpack.c.b16 %v1575, %v1563
    %v1972 = vpack.c.b16 %v1576, %v1564
    %v1973 = vpack.c.b16 %v1577, %v1565
    %v1974 = vpack.c.b16 %v1578, %v1566
    %v1975 = vpack.c.b16 %v1579, %v1567
    %v1976 = vpack.c.b16 %v1592, %v1580
    %v1977 = vpack.c.b16 %v1593, %v1581
    %v1978 = vpack.c.b16 %v1594, %v1582
    %v1979 = vpack.c.b16 %v1595, %v1583
    %v1980 = vpack.c.b16 %v1596, %v1584
    %v1981 = vpack.c.b16 %v1597, %v1585
    %v1982 = vpack.c.b16 %v1598, %v1586
    %v1983 = vpack.c.b16 %v1599, %v1587
    %v1984 = vpack.c.b16 %v1600, %v1588
    %v1985 = vpack.c.b16 %v1601, %v1589
    %v1986 = vpack.c.b16 %v1602, %v1590
    %v1987 = vpack.c.b16 %v1603, %v1591
    %2372 = vmatprep.subr.bf16.mxu0 %v1689
    %2373 = vmatpush1.bf16.msra.mxu0 %v1688
    %2374 = vmatprep.subr.bf16.mxu0 %v1677
    %2375 = vmatpush1.bf16.msra.mxu0 %v1676
    %2376 = vmatprep.subr.bf16.mxu0 %v1665
    %2377 = vmatpush1.bf16.msra.mxu0 %v1664
    %2378 = vmatprep.subr.bf16.mxu0 %v1653
    %2379 = vmatpush1.bf16.msra.mxu0 %v1652
    %2380 = vmatprep.subr.bf16.mxu0 %v1641
    %2381 = vmatpush1.bf16.msra.mxu0 %v1640
    %2382 = vmatprep.subr.bf16.mxu0 %v1629
    %2383 = vmatpush1.bf16.msra.mxu0 %v1628
    %2384 = vmatprep.subr.bf16.mxu0 %v1617
    %2385 = vmatpush1.bf16.msra.mxu0 %v1616
    %2386 = vmatprep.subr.bf16.mxu0 %v1605
    %2387 = vmatpush1.bf16.msra.mxu0 %v1604
    %2388 = vmatprep.subr.bf16.mxu0 %v1785
    %2389 = vmatpush2.bf16.msra.mxu0 %v1784
    %2390 = vmatprep.subr.bf16.mxu0 %v1773
    %2391 = vmatpush2.bf16.msra.mxu0 %v1772
    %2392 = vmatprep.subr.bf16.mxu0 %v1761
    %2393 = vmatpush2.bf16.msra.mxu0 %v1760
    %2394 = vmatprep.subr.bf16.mxu0 %v1749
    %2395 = vmatpush2.bf16.msra.mxu0 %v1748
    %2396 = vmatprep.subr.bf16.mxu0 %v1737
    %2397 = vmatpush2.bf16.msra.mxu0 %v1736
    %2398 = vmatprep.subr.bf16.mxu0 %v1725
    %2399 = vmatpush2.bf16.msra.mxu0 %v1724
    %2400 = vmatprep.subr.bf16.mxu0 %v1713
    %2401 = vmatpush2.bf16.msra.mxu0 %v1712
    %2402 = vmatprep.subr.bf16.mxu0 %v1701
    %2403 = vmatpush2.bf16.msra.mxu0 %v1700
    %2404 = vmatprep.mubr.bf16.mxu0 %v445
    %2405 = vmatmul.mubr.bf16.gmra.mxu0 %v444
    %v2406 = vpop.f32.mrf.mxu0
    %v2407 = vadd.f32 0.0, %v2406
    %v2408 = vpop.f32.mrf.mxu0
    %v2409 = vadd.f32 0.0, %v2408
    %v2410 = vpop.f32.mrf.mxu0
    %v2411 = vpop.f32.mrf.mxu0
    %2412 = vdwg.mxu0
    %2413 = vmatprep.subr.bf16.mxu0 %v1881
    %2414 = vmatpush1.bf16.msra.mxu0 %v1880
    %2415 = vmatprep.subr.bf16.mxu0 %v1869
    %2416 = vmatpush1.bf16.msra.mxu0 %v1868
    %2417 = vmatprep.subr.bf16.mxu0 %v1857
    %2418 = vmatpush1.bf16.msra.mxu0 %v1856
    %2419 = vmatprep.subr.bf16.mxu0 %v1845
    %2420 = vmatpush1.bf16.msra.mxu0 %v1844
    %2421 = vmatprep.subr.bf16.mxu0 %v1833
    %2422 = vmatpush1.bf16.msra.mxu0 %v1832
    %2423 = vmatprep.subr.bf16.mxu0 %v1821
    %2424 = vmatpush1.bf16.msra.mxu0 %v1820
    %2425 = vmatprep.subr.bf16.mxu0 %v1809
    %2426 = vmatpush1.bf16.msra.mxu0 %v1808
    %2427 = vmatprep.subr.bf16.mxu0 %v1797
    %2428 = vmatpush1.bf16.msra.mxu0 %v1796
    %2429 = vmatprep.subr.bf16.mxu0 %v1977
    %2430 = vmatpush2.bf16.msra.mxu0 %v1976
    %2431 = vmatprep.subr.bf16.mxu0 %v1965
    %2432 = vmatpush2.bf16.msra.mxu0 %v1964
    %2433 = vmatprep.subr.bf16.mxu0 %v1953
    %2434 = vmatpush2.bf16.msra.mxu0 %v1952
    %2435 = vmatprep.subr.bf16.mxu0 %v1941
    %2436 = vmatpush2.bf16.msra.mxu0 %v1940
    %2437 = vmatprep.subr.bf16.mxu0 %v1929
    %2438 = vmatpush2.bf16.msra.mxu0 %v1928
    %2439 = vmatprep.subr.bf16.mxu0 %v1917
    %2440 = vmatpush2.bf16.msra.mxu0 %v1916
    %2441 = vmatprep.subr.bf16.mxu0 %v1905
    %2442 = vmatpush2.bf16.msra.mxu0 %v1904
    %2443 = vmatprep.subr.bf16.mxu0 %v1893
    %2444 = vmatpush2.bf16.msra.mxu0 %v1892
    %2445 = vmatprep.mubr.bf16.mxu0 %v447
    %2446 = vmatmul.mubr.bf16.gmra.mxu0 %v446
    %v2447 = vpop.f32.mrf.mxu0
    %v2448 = vadd.f32 %v2407, %v2447
    %v2449 = vpop.f32.mrf.mxu0
    %v2450 = vadd.f32 %v2409, %v2449
    %v2451 = vpop.f32.mrf.mxu0
    %v2452 = vpop.f32.mrf.mxu0
    %2453 = vdwg.mxu0
    %2454 = vmatprep.subr.bf16.mxu0 %v1691
    %2455 = vmatpush1.bf16.msra.mxu0 %v1690
    %2456 = vmatprep.subr.bf16.mxu0 %v1679
    %2457 = vmatpush1.bf16.msra.mxu0 %v1678
    %2458 = vmatprep.subr.bf16.mxu0 %v1667
    %2459 = vmatpush1.bf16.msra.mxu0 %v1666
    %2460 = vmatprep.subr.bf16.mxu0 %v1655
    %2461 = vmatpush1.bf16.msra.mxu0 %v1654
    %2462 = vmatprep.subr.bf16.mxu0 %v1643
    %2463 = vmatpush1.bf16.msra.mxu0 %v1642
    %2464 = vmatprep.subr.bf16.mxu0 %v1631
    %2465 = vmatpush1.bf16.msra.mxu0 %v1630
    %2466 = vmatprep.subr.bf16.mxu0 %v1619
    %2467 = vmatpush1.bf16.msra.mxu0 %v1618
    %2468 = vmatprep.subr.bf16.mxu0 %v1607
    %2469 = vmatpush1.bf16.msra.mxu0 %v1606
    %2470 = vmatprep.subr.bf16.mxu0 %v1787
    %2471 = vmatpush2.bf16.msra.mxu0 %v1786
    %2472 = vmatprep.subr.bf16.mxu0 %v1775
    %2473 = vmatpush2.bf16.msra.mxu0 %v1774
    %2474 = vmatprep.subr.bf16.mxu0 %v1763
    %2475 = vmatpush2.bf16.msra.mxu0 %v1762
    %2476 = vmatprep.subr.bf16.mxu0 %v1751
    %2477 = vmatpush2.bf16.msra.mxu0 %v1750
    %2478 = vmatprep.subr.bf16.mxu0 %v1739
    %2479 = vmatpush2.bf16.msra.mxu0 %v1738
    %2480 = vmatprep.subr.bf16.mxu0 %v1727
    %2481 = vmatpush2.bf16.msra.mxu0 %v1726
    %2482 = vmatprep.subr.bf16.mxu0 %v1715
    %2483 = vmatpush2.bf16.msra.mxu0 %v1714
    %2484 = vmatprep.subr.bf16.mxu0 %v1703
    %2485 = vmatpush2.bf16.msra.mxu0 %v1702
    %2486 = vmatprep.mubr.bf16.mxu0 %v445
    %2487 = vmatmul.mubr.bf16.gmra.mxu0 %v444
    %v2488 = vpop.f32.mrf.mxu0
    %v2489 = vadd.f32 0.0, %v2488
    %v2490 = vpop.f32.mrf.mxu0
    %v2491 = vadd.f32 0.0, %v2490
    %v2492 = vpop.f32.mrf.mxu0
    %v2493 = vpop.f32.mrf.mxu0
    %2494 = vdwg.mxu0
    %2495 = vmatprep.subr.bf16.mxu0 %v1883
    %2496 = vmatpush1.bf16.msra.mxu0 %v1882
    %2497 = vmatprep.subr.bf16.mxu0 %v1871
    %2498 = vmatpush1.bf16.msra.mxu0 %v1870
    %2499 = vmatprep.subr.bf16.mxu0 %v1859
    %2500 = vmatpush1.bf16.msra.mxu0 %v1858
    %2501 = vmatprep.subr.bf16.mxu0 %v1847
    %2502 = vmatpush1.bf16.msra.mxu0 %v1846
    %2503 = vmatprep.subr.bf16.mxu0 %v1835
    %2504 = vmatpush1.bf16.msra.mxu0 %v1834
    %2505 = vmatprep.subr.bf16.mxu0 %v1823
    %2506 = vmatpush1.bf16.msra.mxu0 %v1822
    %2507 = vmatprep.subr.bf16.mxu0 %v1811
    %2508 = vmatpush1.bf16.msra.mxu0 %v1810
    %2509 = vmatprep.subr.bf16.mxu0 %v1799
    %2510 = vmatpush1.bf16.msra.mxu0 %v1798
    %2511 = vmatprep.subr.bf16.mxu0 %v1979
    %2512 = vmatpush2.bf16.msra.mxu0 %v1978
    %2513 = vmatprep.subr.bf16.mxu0 %v1967
    %2514 = vmatpush2.bf16.msra.mxu0 %v1966
    %2515 = vmatprep.subr.bf16.mxu0 %v1955
    %2516 = vmatpush2.bf16.msra.mxu0 %v1954
    %2517 = vmatprep.subr.bf16.mxu0 %v1943
    %2518 = vmatpush2.bf16.msra.mxu0 %v1942
    %2519 = vmatprep.subr.bf16.mxu0 %v1931
    %2520 = vmatpush2.bf16.msra.mxu0 %v1930
    %2521 = vmatprep.subr.bf16.mxu0 %v1919
    %2522 = vmatpush2.bf16.msra.mxu0 %v1918
    %2523 = vmatprep.subr.bf16.mxu0 %v1907
    %2524 = vmatpush2.bf16.msra.mxu0 %v1906
    %2525 = vmatprep.subr.bf16.mxu0 %v1895
    %2526 = vmatpush2.bf16.msra.mxu0 %v1894
    %2527 = vmatprep.mubr.bf16.mxu0 %v447
    %2528 = vmatmul.mubr.bf16.gmra.mxu0 %v446
    %v2529 = vpop.f32.mrf.mxu0
    %v2530 = vadd.f32 %v2489, %v2529
    %v2531 = vpop.f32.mrf.mxu0
    %v2532 = vadd.f32 %v2491, %v2531
    %v2533 = vpop.f32.mrf.mxu0
    %v2534 = vpop.f32.mrf.mxu0
    %2535 = vdwg.mxu0
    %2536 = vmatprep.subr.bf16.mxu0 %v1693
    %2537 = vmatpush1.bf16.msra.mxu0 %v1692
    %2538 = vmatprep.subr.bf16.mxu0 %v1681
    %2539 = vmatpush1.bf16.msra.mxu0 %v1680
    %2540 = vmatprep.subr.bf16.mxu0 %v1669
    %2541 = vmatpush1.bf16.msra.mxu0 %v1668
    %2542 = vmatprep.subr.bf16.mxu0 %v1657
    %2543 = vmatpush1.bf16.msra.mxu0 %v1656
    %2544 = vmatprep.subr.bf16.mxu0 %v1645
    %2545 = vmatpush1.bf16.msra.mxu0 %v1644
    %2546 = vmatprep.subr.bf16.mxu0 %v1633
    %2547 = vmatpush1.bf16.msra.mxu0 %v1632
    %2548 = vmatprep.subr.bf16.mxu0 %v1621
    %2549 = vmatpush1.bf16.msra.mxu0 %v1620
    %2550 = vmatprep.subr.bf16.mxu0 %v1609
    %2551 = vmatpush1.bf16.msra.mxu0 %v1608
    %2552 = vmatprep.subr.bf16.mxu0 %v1789
    %2553 = vmatpush2.bf16.msra.mxu0 %v1788
    %2554 = vmatprep.subr.bf16.mxu0 %v1777
    %2555 = vmatpush2.bf16.msra.mxu0 %v1776
    %2556 = vmatprep.subr.bf16.mxu0 %v1765
    %2557 = vmatpush2.bf16.msra.mxu0 %v1764
    %2558 = vmatprep.subr.bf16.mxu0 %v1753
    %2559 = vmatpush2.bf16.msra.mxu0 %v1752
    %2560 = vmatprep.subr.bf16.mxu0 %v1741
    %2561 = vmatpush2.bf16.msra.mxu0 %v1740
    %2562 = vmatprep.subr.bf16.mxu0 %v1729
    %2563 = vmatpush2.bf16.msra.mxu0 %v1728
    %2564 = vmatprep.subr.bf16.mxu0 %v1717
    %2565 = vmatpush2.bf16.msra.mxu0 %v1716
    %2566 = vmatprep.subr.bf16.mxu0 %v1705
    %2567 = vmatpush2.bf16.msra.mxu0 %v1704
    %2568 = vmatprep.mubr.bf16.mxu0 %v445
    %2569 = vmatmul.mubr.bf16.gmra.mxu0 %v444
    %v2570 = vpop.f32.mrf.mxu0
    %v2571 = vadd.f32 0.0, %v2570
    %v2572 = vpop.f32.mrf.mxu0
    %v2573 = vadd.f32 0.0, %v2572
    %v2574 = vpop.f32.mrf.mxu0
    %v2575 = vpop.f32.mrf.mxu0
    %2576 = vdwg.mxu0
    %2577 = vmatprep.subr.bf16.mxu0 %v1885
    %2578 = vmatpush1.bf16.msra.mxu0 %v1884
    %2579 = vmatprep.subr.bf16.mxu0 %v1873
    %2580 = vmatpush1.bf16.msra.mxu0 %v1872
    %2581 = vmatprep.subr.bf16.mxu0 %v1861
    %2582 = vmatpush1.bf16.msra.mxu0 %v1860
    %2583 = vmatprep.subr.bf16.mxu0 %v1849
    %2584 = vmatpush1.bf16.msra.mxu0 %v1848
    %2585 = vmatprep.subr.bf16.mxu0 %v1837
    %2586 = vmatpush1.bf16.msra.mxu0 %v1836
    %2587 = vmatprep.subr.bf16.mxu0 %v1825
    %2588 = vmatpush1.bf16.msra.mxu0 %v1824
    %2589 = vmatprep.subr.bf16.mxu0 %v1813
    %2590 = vmatpush1.bf16.msra.mxu0 %v1812
    %2591 = vmatprep.subr.bf16.mxu0 %v1801
    %2592 = vmatpush1.bf16.msra.mxu0 %v1800
    %2593 = vmatprep.subr.bf16.mxu0 %v1981
    %2594 = vmatpush2.bf16.msra.mxu0 %v1980
    %2595 = vmatprep.subr.bf16.mxu0 %v1969
    %2596 = vmatpush2.bf16.msra.mxu0 %v1968
    %2597 = vmatprep.subr.bf16.mxu0 %v1957
    %2598 = vmatpush2.bf16.msra.mxu0 %v1956
    %2599 = vmatprep.subr.bf16.mxu0 %v1945
    %2600 = vmatpush2.bf16.msra.mxu0 %v1944
    %2601 = vmatprep.subr.bf16.mxu0 %v1933
    %2602 = vmatpush2.bf16.msra.mxu0 %v1932
    %2603 = vmatprep.subr.bf16.mxu0 %v1921
    %2604 = vmatpush2.bf16.msra.mxu0 %v1920
    %2605 = vmatprep.subr.bf16.mxu0 %v1909
    %2606 = vmatpush2.bf16.msra.mxu0 %v1908
    %2607 = vmatprep.subr.bf16.mxu0 %v1897
    %2608 = vmatpush2.bf16.msra.mxu0 %v1896
    %2609 = vmatprep.mubr.bf16.mxu0 %v447
    %2610 = vmatmul.mubr.bf16.gmra.mxu0 %v446
    %v2611 = vpop.f32.mrf.mxu0
    %v2612 = vadd.f32 %v2571, %v2611
    %v2613 = vpop.f32.mrf.mxu0
    %v2614 = vadd.f32 %v2573, %v2613
    %v2615 = vpop.f32.mrf.mxu0
    %v2616 = vpop.f32.mrf.mxu0
    %2617 = vdwg.mxu0
    %2618 = vmatprep.subr.bf16.mxu0 %v1695
    %2619 = vmatpush1.bf16.msra.mxu0 %v1694
    %2620 = vmatprep.subr.bf16.mxu0 %v1683
    %2621 = vmatpush1.bf16.msra.mxu0 %v1682
    %2622 = vmatprep.subr.bf16.mxu0 %v1671
    %2623 = vmatpush1.bf16.msra.mxu0 %v1670
    %2624 = vmatprep.subr.bf16.mxu0 %v1659
    %2625 = vmatpush1.bf16.msra.mxu0 %v1658
    %2626 = vmatprep.subr.bf16.mxu0 %v1647
    %2627 = vmatpush1.bf16.msra.mxu0 %v1646
    %2628 = vmatprep.subr.bf16.mxu0 %v1635
    %2629 = vmatpush1.bf16.msra.mxu0 %v1634
    %2630 = vmatprep.subr.bf16.mxu0 %v1623
    %2631 = vmatpush1.bf16.msra.mxu0 %v1622
    %2632 = vmatprep.subr.bf16.mxu0 %v1611
    %2633 = vmatpush1.bf16.msra.mxu0 %v1610
    %2634 = vmatprep.subr.bf16.mxu0 %v1791
    %2635 = vmatpush2.bf16.msra.mxu0 %v1790
    %2636 = vmatprep.subr.bf16.mxu0 %v1779
    %2637 = vmatpush2.bf16.msra.mxu0 %v1778
    %2638 = vmatprep.subr.bf16.mxu0 %v1767
    %2639 = vmatpush2.bf16.msra.mxu0 %v1766
    %2640 = vmatprep.subr.bf16.mxu0 %v1755
    %2641 = vmatpush2.bf16.msra.mxu0 %v1754
    %2642 = vmatprep.subr.bf16.mxu0 %v1743
    %2643 = vmatpush2.bf16.msra.mxu0 %v1742
    %2644 = vmatprep.subr.bf16.mxu0 %v1731
    %2645 = vmatpush2.bf16.msra.mxu0 %v1730
    %2646 = vmatprep.subr.bf16.mxu0 %v1719
    %2647 = vmatpush2.bf16.msra.mxu0 %v1718
    %2648 = vmatprep.subr.bf16.mxu0 %v1707
    %2649 = vmatpush2.bf16.msra.mxu0 %v1706
    %2650 = vmatprep.mubr.bf16.mxu0 %v445
    %2651 = vmatmul.mubr.bf16.gmra.mxu0 %v444
    %v2652 = vpop.f32.mrf.mxu0
    %v2653 = vadd.f32 0.0, %v2652
    %v2654 = vpop.f32.mrf.mxu0
    %v2655 = vadd.f32 0.0, %v2654
    %v2656 = vpop.f32.mrf.mxu0
    %v2657 = vpop.f32.mrf.mxu0
    %2658 = vdwg.mxu0
    %2659 = vmatprep.subr.bf16.mxu0 %v1887
    %2660 = vmatpush1.bf16.msra.mxu0 %v1886
    %2661 = vmatprep.subr.bf16.mxu0 %v1875
    %2662 = vmatpush1.bf16.msra.mxu0 %v1874
    %2663 = vmatprep.subr.bf16.mxu0 %v1863
    %2664 = vmatpush1.bf16.msra.mxu0 %v1862
    %2665 = vmatprep.subr.bf16.mxu0 %v1851
    %2666 = vmatpush1.bf16.msra.mxu0 %v1850
    %2667 = vmatprep.subr.bf16.mxu0 %v1839
    %2668 = vmatpush1.bf16.msra.mxu0 %v1838
    %2669 = vmatprep.subr.bf16.mxu0 %v1827
    %2670 = vmatpush1.bf16.msra.mxu0 %v1826
    %2671 = vmatprep.subr.bf16.mxu0 %v1815
    %2672 = vmatpush1.bf16.msra.mxu0 %v1814
    %2673 = vmatprep.subr.bf16.mxu0 %v1803
    %2674 = vmatpush1.bf16.msra.mxu0 %v1802
    %2675 = vmatprep.subr.bf16.mxu0 %v1983
    %2676 = vmatpush2.bf16.msra.mxu0 %v1982
    %2677 = vmatprep.subr.bf16.mxu0 %v1971
    %2678 = vmatpush2.bf16.msra.mxu0 %v1970
    %2679 = vmatprep.subr.bf16.mxu0 %v1959
    %2680 = vmatpush2.bf16.msra.mxu0 %v1958
    %2681 = vmatprep.subr.bf16.mxu0 %v1947
    %2682 = vmatpush2.bf16.msra.mxu0 %v1946
    %2683 = vmatprep.subr.bf16.mxu0 %v1935
    %2684 = vmatpush2.bf16.msra.mxu0 %v1934
    %2685 = vmatprep.subr.bf16.mxu0 %v1923
    %2686 = vmatpush2.bf16.msra.mxu0 %v1922
    %2687 = vmatprep.subr.bf16.mxu0 %v1911
    %2688 = vmatpush2.bf16.msra.mxu0 %v1910
    %2689 = vmatprep.subr.bf16.mxu0 %v1899
    %2690 = vmatpush2.bf16.msra.mxu0 %v1898
    %2691 = vmatprep.mubr.bf16.mxu0 %v447
    %2692 = vmatmul.mubr.bf16.gmra.mxu0 %v446
    %v2693 = vpop.f32.mrf.mxu0
    %v2694 = vadd.f32 %v2653, %v2693
    %v2695 = vpop.f32.mrf.mxu0
    %v2696 = vadd.f32 %v2655, %v2695
    %v2697 = vpop.f32.mrf.mxu0
    %v2698 = vpop.f32.mrf.mxu0
    %2699 = vdwg.mxu0
    %2700 = vmatprep.subr.bf16.mxu0 %v1697
    %2701 = vmatpush1.bf16.msra.mxu0 %v1696
    %2702 = vmatprep.subr.bf16.mxu0 %v1685
    %2703 = vmatpush1.bf16.msra.mxu0 %v1684
    %2704 = vmatprep.subr.bf16.mxu0 %v1673
    %2705 = vmatpush1.bf16.msra.mxu0 %v1672
    %2706 = vmatprep.subr.bf16.mxu0 %v1661
    %2707 = vmatpush1.bf16.msra.mxu0 %v1660
    %2708 = vmatprep.subr.bf16.mxu0 %v1649
    %2709 = vmatpush1.bf16.msra.mxu0 %v1648
    %2710 = vmatprep.subr.bf16.mxu0 %v1637
    %2711 = vmatpush1.bf16.msra.mxu0 %v1636
    %2712 = vmatprep.subr.bf16.mxu0 %v1625
    %2713 = vmatpush1.bf16.msra.mxu0 %v1624
    %2714 = vmatprep.subr.bf16.mxu0 %v1613
    %2715 = vmatpush1.bf16.msra.mxu0 %v1612
    %2716 = vmatprep.subr.bf16.mxu0 %v1793
    %2717 = vmatpush2.bf16.msra.mxu0 %v1792
    %2718 = vmatprep.subr.bf16.mxu0 %v1781
    %2719 = vmatpush2.bf16.msra.mxu0 %v1780
    %2720 = vmatprep.subr.bf16.mxu0 %v1769
    %2721 = vmatpush2.bf16.msra.mxu0 %v1768
    %2722 = vmatprep.subr.bf16.mxu0 %v1757
    %2723 = vmatpush2.bf16.msra.mxu0 %v1756
    %2724 = vmatprep.subr.bf16.mxu0 %v1745
    %2725 = vmatpush2.bf16.msra.mxu0 %v1744
    %2726 = vmatprep.subr.bf16.mxu0 %v1733
    %2727 = vmatpush2.bf16.msra.mxu0 %v1732
    %2728 = vmatprep.subr.bf16.mxu0 %v1721
    %2729 = vmatpush2.bf16.msra.mxu0 %v1720
    %2730 = vmatprep.subr.bf16.mxu0 %v1709
    %2731 = vmatpush2.bf16.msra.mxu0 %v1708
    %2732 = vmatprep.mubr.bf16.mxu0 %v445
    %2733 = vmatmul.mubr.bf16.gmra.mxu0 %v444
    %v2734 = vpop.f32.mrf.mxu0
    %v2735 = vadd.f32 0.0, %v2734
    %v2736 = vpop.f32.mrf.mxu0
    %v2737 = vadd.f32 0.0, %v2736
    %v2738 = vpop.f32.mrf.mxu0
    %v2739 = vpop.f32.mrf.mxu0
    %2740 = vdwg.mxu0
    %2741 = vmatprep.subr.bf16.mxu0 %v1889
    %2742 = vmatpush1.bf16.msra.mxu0 %v1888
    %2743 = vmatprep.subr.bf16.mxu0 %v1877
    %2744 = vmatpush1.bf16.msra.mxu0 %v1876
    %2745 = vmatprep.subr.bf16.mxu0 %v1865
    %2746 = vmatpush1.bf16.msra.mxu0 %v1864
    %2747 = vmatprep.subr.bf16.mxu0 %v1853
    %2748 = vmatpush1.bf16.msra.mxu0 %v1852
    %2749 = vmatprep.subr.bf16.mxu0 %v1841
    %2750 = vmatpush1.bf16.msra.mxu0 %v1840
    %2751 = vmatprep.subr.bf16.mxu0 %v1829
    %2752 = vmatpush1.bf16.msra.mxu0 %v1828
    %2753 = vmatprep.subr.bf16.mxu0 %v1817
    %2754 = vmatpush1.bf16.msra.mxu0 %v1816
    %2755 = vmatprep.subr.bf16.mxu0 %v1805
    %2756 = vmatpush1.bf16.msra.mxu0 %v1804
    %2757 = vmatprep.subr.bf16.mxu0 %v1985
    %2758 = vmatpush2.bf16.msra.mxu0 %v1984
    %2759 = vmatprep.subr.bf16.mxu0 %v1973
    %2760 = vmatpush2.bf16.msra.mxu0 %v1972
    %2761 = vmatprep.subr.bf16.mxu0 %v1961
    %2762 = vmatpush2.bf16.msra.mxu0 %v1960
    %2763 = vmatprep.subr.bf16.mxu0 %v1949
    %2764 = vmatpush2.bf16.msra.mxu0 %v1948
    %2765 = vmatprep.subr.bf16.mxu0 %v1937
    %2766 = vmatpush2.bf16.msra.mxu0 %v1936
    %2767 = vmatprep.subr.bf16.mxu0 %v1925
    %2768 = vmatpush2.bf16.msra.mxu0 %v1924
    %2769 = vmatprep.subr.bf16.mxu0 %v1913
    %2770 = vmatpush2.bf16.msra.mxu0 %v1912
    %2771 = vmatprep.subr.bf16.mxu0 %v1901
    %2772 = vmatpush2.bf16.msra.mxu0 %v1900
    %2773 = vmatprep.mubr.bf16.mxu0 %v447
    %2774 = vmatmul.mubr.bf16.gmra.mxu0 %v446
    %v2775 = vpop.f32.mrf.mxu0
    %v2776 = vadd.f32 %v2735, %v2775
    %v2777 = vpop.f32.mrf.mxu0
    %v2778 = vadd.f32 %v2737, %v2777
    %v2779 = vpop.f32.mrf.mxu0
    %v2780 = vpop.f32.mrf.mxu0
    %2781 = vdwg.mxu0
    %2782 = vmatprep.subr.bf16.mxu0 %v1699
    %2783 = vmatpush1.bf16.msra.mxu0 %v1698
    %2784 = vmatprep.subr.bf16.mxu0 %v1687
    %2785 = vmatpush1.bf16.msra.mxu0 %v1686
    %2786 = vmatprep.subr.bf16.mxu0 %v1675
    %2787 = vmatpush1.bf16.msra.mxu0 %v1674
    %2788 = vmatprep.subr.bf16.mxu0 %v1663
    %2789 = vmatpush1.bf16.msra.mxu0 %v1662
    %2790 = vmatprep.subr.bf16.mxu0 %v1651
    %2791 = vmatpush1.bf16.msra.mxu0 %v1650
    %2792 = vmatprep.subr.bf16.mxu0 %v1639
    %2793 = vmatpush1.bf16.msra.mxu0 %v1638
    %2794 = vmatprep.subr.bf16.mxu0 %v1627
    %2795 = vmatpush1.bf16.msra.mxu0 %v1626
    %2796 = vmatprep.subr.bf16.mxu0 %v1615
    %2797 = vmatpush1.bf16.msra.mxu0 %v1614
    %2798 = vmatprep.subr.bf16.mxu0 %v1795
    %2799 = vmatpush2.bf16.msra.mxu0 %v1794
    %2800 = vmatprep.subr.bf16.mxu0 %v1783
    %2801 = vmatpush2.bf16.msra.mxu0 %v1782
    %2802 = vmatprep.subr.bf16.mxu0 %v1771
    %2803 = vmatpush2.bf16.msra.mxu0 %v1770
    %2804 = vmatprep.subr.bf16.mxu0 %v1759
    %2805 = vmatpush2.bf16.msra.mxu0 %v1758
    %2806 = vmatprep.subr.bf16.mxu0 %v1747
    %2807 = vmatpush2.bf16.msra.mxu0 %v1746
    %2808 = vmatprep.subr.bf16.mxu0 %v1735
    %2809 = vmatpush2.bf16.msra.mxu0 %v1734
    %2810 = vmatprep.subr.bf16.mxu0 %v1723
    %2811 = vmatpush2.bf16.msra.mxu0 %v1722
    %2812 = vmatprep.subr.bf16.mxu0 %v1711
    %2813 = vmatpush2.bf16.msra.mxu0 %v1710
    %2814 = vmatprep.mubr.bf16.mxu0 %v445
    %2815 = vmatmul.mubr.bf16.gmra.mxu0 %v444
    %v2816 = vpop.f32.mrf.mxu0
    %v2817 = vadd.f32 0.0, %v2816
    %v2818 = vpop.f32.mrf.mxu0
    %v2819 = vadd.f32 0.0, %v2818
    %v2820 = vpop.f32.mrf.mxu0
    %v2821 = vpop.f32.mrf.mxu0
    %2822 = vdwg.mxu0
    %2823 = vmatprep.subr.bf16.mxu0 %v1891
    %2824 = vmatpush1.bf16.msra.mxu0 %v1890
    %2825 = vmatprep.subr.bf16.mxu0 %v1879
    %2826 = vmatpush1.bf16.msra.mxu0 %v1878
    %2827 = vmatprep.subr.bf16.mxu0 %v1867
    %2828 = vmatpush1.bf16.msra.mxu0 %v1866
    %2829 = vmatprep.subr.bf16.mxu0 %v1855
    %2830 = vmatpush1.bf16.msra.mxu0 %v1854
    %2831 = vmatprep.subr.bf16.mxu0 %v1843
    %2832 = vmatpush1.bf16.msra.mxu0 %v1842
    %2833 = vmatprep.subr.bf16.mxu0 %v1831
    %2834 = vmatpush1.bf16.msra.mxu0 %v1830
    %2835 = vmatprep.subr.bf16.mxu0 %v1819
    %2836 = vmatpush1.bf16.msra.mxu0 %v1818
    %2837 = vmatprep.subr.bf16.mxu0 %v1807
    %2838 = vmatpush1.bf16.msra.mxu0 %v1806
    %2839 = vmatprep.subr.bf16.mxu0 %v1987
    %2840 = vmatpush2.bf16.msra.mxu0 %v1986
    %2841 = vmatprep.subr.bf16.mxu0 %v1975
    %2842 = vmatpush2.bf16.msra.mxu0 %v1974
    %2843 = vmatprep.subr.bf16.mxu0 %v1963
    %2844 = vmatpush2.bf16.msra.mxu0 %v1962
    %2845 = vmatprep.subr.bf16.mxu0 %v1951
    %2846 = vmatpush2.bf16.msra.mxu0 %v1950
    %2847 = vmatprep.subr.bf16.mxu0 %v1939
    %2848 = vmatpush2.bf16.msra.mxu0 %v1938
    %2849 = vmatprep.subr.bf16.mxu0 %v1927
    %2850 = vmatpush2.bf16.msra.mxu0 %v1926
    %2851 = vmatprep.subr.bf16.mxu0 %v1915
    %2852 = vmatpush2.bf16.msra.mxu0 %v1914
    %2853 = vmatprep.subr.bf16.mxu0 %v1903
    %2854 = vmatpush2.bf16.msra.mxu0 %v1902
    %2855 = vmatprep.mubr.bf16.mxu0 %v447
    %2856 = vmatmul.mubr.bf16.gmra.mxu0 %v446
    %v2857 = vpop.f32.mrf.mxu0
    %v2858 = vadd.f32 %v2817, %v2857
    %v2859 = vpop.f32.mrf.mxu0
    %v2860 = vadd.f32 %v2819, %v2859
    %v2861 = vpop.f32.mrf.mxu0
    %v2862 = vpop.f32.mrf.mxu0
    %2863 = vdwg.mxu0
    %v2864 = vmax.f32 %v2448, %v2450
    %v2865 = vmax.f32 %v2864, %v2530
    %v2866 = vmax.f32 %v2865, %v2532
    %v2867 = vmax.f32 %v2866, %v2612
    %v2868 = vmax.f32 %v2867, %v2614
    %v2869 = vmax.f32 %v2868, %v2694
    %v2870 = vmax.f32 %v2869, %v2696
    %v2871 = vmax.f32 %v2870, %v2776
    %v2872 = vmax.f32 %v2871, %v2778
    %v2873 = vmax.f32 %v2872, %v2858
    %v2874 = vmax.f32 %v2873, %v2860
    %v2875 = vld [vmem:[#allocation7] sm:$0x1]
    %v2877 = vlaneseq
    %v2878 = vshrl.u32 %v2877, 7
    %v2879 = vsub.s32 0, %v2878
    %v2880 = vrot.slane %v2875, %v2879
    %v2882 = vadd.f32 %v2874, %v2880
    %v2883 = vmax.f32 %v2882, 0.0
    %2884 = vst [vmem:[#allocation8] sm:$0xff] %v2883
    // Predicated region
    $region26: #{tpu_custom_call.1} parent=1 // pred_check
      _
    $region27: #{tpu_custom_call.1} parent=1 // pred_check_branch
      %2886 = sbr.rel (0) target = $region29
    $region28: #{tpu_custom_call.1} parent=1 // pred_region
      %s2888 = ssub.s32 128, 128
      %2889 = vsyncadd [#allocation4], %s2888
      %s2891 = sshll.u32 [#allocation8], 4
      %s2892 = int_to_ptr.vmem [resolvable:$true] %s2891
      %2894 = dma.vmem_to_hbm [thread:$0]  %s2892, 128, %s3, [#allocation4]
    $region29: #{tpu_custom_call.1} parent=1 // pred_fallthru
      _
    // Predicated region
    $region30: #{tpu_custom_call.1} parent=1 // pred_check
      _
    $region31: #{tpu_custom_call.1} parent=1 // pred_check_branch
      %2896 = sbr.rel (0) target = $region33
    $region32: #{tpu_custom_call.1} parent=1 // pred_region
      %2897 = dma.done [#allocation4], 128
    $region33: #{tpu_custom_call.1} parent=1 // pred_fallthru
      _
    %2898 = vsyncpa [#allocation3], 1
    %2899 = vsyncpa [#allocation6], 1
    %2900 = vsyncpa [#allocation4], 1

</llo_original>
